<compile_context>
chip_gen: v7x
topology: tpu7x:2x2x1
jax: 0.10.0
libtpu: 0.0.40
codegen_flags: <defaults>
</compile_context>

<pallas_src>
import jax
import jax.numpy as jnp
import numpy as np
from jax.experimental import pallas as pl
from jax.experimental.pallas import tpu as pltpu


# --------------------------------------------------------------------------- helpers
def _round_up(n, m):
    return (n + m - 1) // m * m


def _vmem_capacity_bytes():
    """Chip-aware VMEM capacity (128 MiB on v5e/v6e, 64 MiB on v7x)."""
    try:
        cap = int(getattr(pltpu.get_tpu_info(), "vmem_capacity_bytes"))
        if cap > 0:
            return cap
    except Exception:
        pass
    return 64 * 1024 * 1024            # conservative fallback (v7x physical VMEM)


def _choose_tk(K, N, in_bytes, budget):
    """Reduction tile: keep the whole circulant resident unless it blows the
    VMEM budget (hit first on v7x); then stream K in 128-lane multiples."""
    if K % 128 != 0 or 2 * K * N * in_bytes <= budget // 2:
        return K
    target = max(128, (budget // 2) // max(2 * N * in_bytes, 1))
    tk = 128
    for cand in range(128, K + 1, 128):
        if K % cand == 0 and cand <= target:
            tk = cand
    return tk


def _choose_tr(R, tk, N, in_bytes, out_bytes, budget):
    """Row tile.  No forced grid split: take the full (sublane-rounded) row
    range if it fits the budget; otherwise prefer 256-row multiples (MXU height
    on v6e/v7x).  Sublane rounding follows the MXU operand dtype."""
    sub = max(8, 32 // in_bytes)                           # 8 f32 / 16 bf16 / 32 int8
    fixed = 2 * tk * N * in_bytes + 2 * N * 4              # buffered weight tile + bias
    per_row = 2 * (tk * in_bytes + N * out_bytes) + N * 4  # dbl-buffered x/out + f32 acc
    tr_budget = max(sub, (budget - fixed) // max(per_row, 1))
    r_full = _round_up(R, sub)
    if r_full <= tr_budget:
        return r_full
    tr = int(min(tr_budget, 2048))
    if tr >= 256:
        return (tr // 256) * 256
    return max(sub, (tr // sub) * sub)


def _build_circulant(w, L, C):
    """Wc[(q,ci),(p,co)] = w[(q - p) mod L, ci, co], shape (L*C, L*C)."""
    q = jnp.arange(L)[:, None]
    p = jnp.arange(L)[None, :]
    idx = (q - p) % L                                    # (L, L)
    wc4 = w[idx]                                         # (L, L, C, C) = [q, p, ci, co]
    wc4 = jnp.transpose(wc4, (0, 2, 1, 3))               # [q, ci, p, co]
    return wc4.reshape(L * C, L * C)


# --------------------------------------------------------------------------- kernels
def _gemm_kernel(x_ref, w_ref, b_ref, o_ref):
    # x:(TR,K) w:(K,N) b:(1,N) o:(TR,N) — single MXU GEMM, f32 accumulation.
    acc = jnp.dot(x_ref[...], w_ref[...], preferred_element_type=jnp.float32)
    o_ref[...] = (acc + b_ref[...]).astype(o_ref.dtype)


def _gemm_ktiled_kernel(x_ref, w_ref, b_ref, o_ref, acc_ref):
    # Reduction (K) streamed over the last grid axis; f32 VMEM accumulator.
    @pl.when(pl.program_id(2) == 0)
    def _():
        acc_ref[...] = jnp.zeros_like(acc_ref)

    acc_ref[...] += jnp.dot(x_ref[...], w_ref[...],
                            preferred_element_type=jnp.float32)

    @pl.when(pl.program_id(2) == pl.num_programs(2) - 1)
    def _():
        o_ref[...] = (acc_ref[...] + b_ref[...]).astype(o_ref.dtype)


def _parc_gemm(x3d, wc3d, bias3d, *, out_dtype):
    """out[g] = x3d[g] @ wc3d[g] + bias3d[g] for each fused half g."""
    G, R, K = x3d.shape
    _, _, N = wc3d.shape
    in_bytes = x3d.dtype.itemsize
    out_bytes = jnp.dtype(out_dtype).itemsize

    cap = _vmem_capacity_bytes()
    budget = (cap * 3) // 8
    vmem_limit = cap // 2

    tk = _choose_tk(K, N, in_bytes, budget)
    tr = _choose_tr(R, tk, N, in_bytes, out_bytes, budget)
    Rp = _round_up(R, tr)
    if Rp != R:
        x3d = jnp.pad(x3d, ((0, 0), (0, Rp - R), (0, 0)))

    cost = pl.CostEstimate(
        flops=2 * G * Rp * K * N,
        transcendentals=0,
        bytes_accessed=G * (Rp * K * in_bytes + K * N * in_bytes
                            + Rp * N * out_bytes + N * 4),
    )
    out_shape = jax.ShapeDtypeStruct((G, Rp, N), out_dtype)

    # NOTE: the circulant weight's index_map depends on the (parallel) half axis,
    # so default double-buffering usefully prefetches the other half's weights;
    # single-buffering it only pays off once tk*N approaches the VMEM budget.
    if tk == K:
        grid_spec = pltpu.PrefetchScalarGridSpec(
            num_scalar_prefetch=0,
            grid=(G, Rp // tr),
            in_specs=[
                pl.BlockSpec((None, tr, K), lambda g, i: (g, i, 0)),
                pl.BlockSpec((None, K, N), lambda g, i: (g, 0, 0)),
                pl.BlockSpec((None, 1, N), lambda g, i: (g, 0, 0)),
            ],
            out_specs=pl.BlockSpec((None, tr, N), lambda g, i: (g, i, 0)),
        )
        kernel = _gemm_kernel
        semantics = ("parallel", "parallel")
    else:
        grid_spec = pltpu.PrefetchScalarGridSpec(
            num_scalar_prefetch=0,
            grid=(G, Rp // tr, K // tk),
            in_specs=[
                pl.BlockSpec((None, tr, tk), lambda g, i, k: (g, i, k)),
                pl.BlockSpec((None, tk, N), lambda g, i, k: (g, k, 0)),
                pl.BlockSpec((None, 1, N), lambda g, i, k: (g, 0, 0)),
            ],
            out_specs=pl.BlockSpec((None, tr, N), lambda g, i, k: (g, i, 0)),
            scratch_shapes=[pltpu.VMEM((tr, N), jnp.float32)],
        )
        kernel = _gemm_ktiled_kernel
        semantics = ("parallel", "parallel", "arbitrary")

    out = pl.pallas_call(
        kernel,
        out_shape=out_shape,
        grid_spec=grid_spec,
        compiler_params=pltpu.CompilerParams(
            dimension_semantics=semantics,
            vmem_limit_bytes=vmem_limit,
        ),
        cost_estimate=cost,
    )(x3d, wc3d, bias3d)
    return out[:, :R] if Rp != R else out


# --------------------------------------------------------------------------- param prep
def _prepare_half(params, L, C, *, use_pe, depthwise):
    w, b, pe = params['w'], params['b'], params['pe']
    # Glue: ParC meta-kernel / PE live at init_kernel_size and are resized to the
    # actual feature size (mirrors F.interpolate in the PyTorch op).
    if w.shape[0] != L:
        w = jax.image.resize(w, (L,) + w.shape[1:], method='linear')
    if pe.shape[0] != L:
        pe = jax.image.resize(pe, (L, C), method='linear')
    if depthwise:
        w = w[:, 0, :][:, None, :] * jnp.eye(C, dtype=w.dtype)[None, :, :]
    wc = _build_circulant(w.astype(jnp.float32), L, C)                       # (K, K)
    eff_bias = jnp.broadcast_to(b.astype(jnp.float32), (L, C)).reshape(1, L * C)
    if use_pe:
        # The conv is linear and the PE is row-independent: fold PE into the bias.
        eff_bias = eff_bias + pe.astype(jnp.float32).reshape(1, L * C) @ wc
    return wc, eff_bias


def prepare_parc_block(params_h, params_v, channels, H, W, *,
                       use_pe=True, depthwise=False, mxu_dtype=None):
    """Precompute circulant weights / effective biases once (parameter-prep time)."""
    Ch = channels // 2
    if mxu_dtype is None:
        mxu_dtype = jnp.bfloat16          # MXU-native operands; f32 accumulation
    wc_h, bias_h = _prepare_half(params_h, W, Ch, use_pe=use_pe, depthwise=depthwise)
    wc_v, bias_v = _prepare_half(params_v, H, Ch, use_pe=use_pe, depthwise=depthwise)
    if H == W:                            # fused H/V path: one pallas_call
        prepared = dict(fused=True,
                        wc=jnp.stack([wc_h, wc_v]).astype(mxu_dtype),    # (2, K, K)
                        bias=jnp.stack([bias_h, bias_v]))                # (2, 1, K) f32
    else:
        prepared = dict(fused=False,
                        wc_h=wc_h.astype(mxu_dtype), bias_h=bias_h,
                        wc_v=wc_v.astype(mxu_dtype), bias_v=bias_v)
    prepared.update(mxu_dtype=mxu_dtype)
    return prepared


# --------------------------------------------------------------------------- forward
def parc_block(x, prepared):
    """ParCBlock forward.  x: NCHW."""
    B, C, H, W = x.shape
    Ch = C // 2
    mxu_dtype = prepared['mxu_dtype']
    out_dtype = x.dtype

    # Flatten each half to (rows, L*C) slabs (column index = position*C + ci).
    xh = jnp.transpose(x[:, :Ch], (0, 2, 3, 1)).reshape(B * H, W * Ch)   # H-op rows
    xv = jnp.transpose(x[:, Ch:], (0, 3, 2, 1)).reshape(B * W, H * Ch)   # V-op rows

    if prepared['fused']:
        x3d = jnp.stack([xh, xv]).astype(mxu_dtype)                      # (2, R, K)
        out3d = _parc_gemm(x3d, prepared['wc'], prepared['bias'], out_dtype=out_dtype)
        oh = out3d[0].reshape(B, H, W, Ch)
        ov = out3d[1].reshape(B, W, H, Ch)
    else:
        oh = _parc_gemm(xh.astype(mxu_dtype)[None], prepared['wc_h'][None],
                        prepared['bias_h'][None],
                        out_dtype=out_dtype)[0].reshape(B, H, W, Ch)
        ov = _parc_gemm(xv.astype(mxu_dtype)[None], prepared['wc_v'][None],
                        prepared['bias_v'][None],
                        out_dtype=out_dtype)[0].reshape(B, W, H, Ch)

    oh = jnp.transpose(oh, (0, 3, 1, 2))        # (B, Ch, H, W)
    ov = jnp.transpose(ov, (0, 3, 2, 1))        # (B, Ch, H, W)
    return jnp.concatenate([oh, ov], axis=1)


# --------------------------------------------------------------------------- params
def init_parc_params(key, channels_half, init_kernel_size, depthwise):
    kw, kb, kp = jax.random.split(key, 3)
    if depthwise:
        w = 0.1 * jax.random.normal(
            kw, (init_kernel_size, 1, channels_half), jnp.float32)
    else:
        w = 0.1 * jax.random.normal(
            kw, (init_kernel_size, channels_half, channels_half), jnp.float32)
    b = 0.1 * jax.random.normal(kb, (1, channels_half), jnp.float32)
    pe = 0.02 * jax.random.normal(kp, (init_kernel_size, channels_half), jnp.float32)
    return {'w': w, 'b': b, 'pe': pe}


# --------------------------------------------------------------------------- pure-JAX reference
def _parc_ref(x, params, orientation, use_pe, depthwise):
    B, C, H, W = x.shape
    w, b, pe = params['w'], params['b'], params['pe']
    if orientation == 'H':
        L, axis = W, 3
        pe4 = jnp.transpose(pe)[None, :, None, :]
    else:
        L, axis = H, 2
        pe4 = jnp.transpose(pe)[None, :, :, None]
    if use_pe:
        x = x + pe4
    acc = jnp.zeros((B, C, H, W), jnp.float32)
    for k in range(L):
        xk = jnp.roll(x, -k, axis=axis)
        if depthwise:
            acc = acc + xk * w[k].reshape(1, C, 1, 1)
        else:
            acc = acc + jnp.einsum('bchw,cd->bdhw', xk, w[k])
    return acc + b.reshape(1, C, 1, 1)


def parc_block_ref(x, params_h, params_v, *, use_pe=True, depthwise=False):
    C = x.shape[1]
    oh = _parc_ref(x[:, :C // 2], params_h, 'H', use_pe, depthwise)
    ov = _parc_ref(x[:, C // 2:], params_v, 'V', use_pe, depthwise)
    return jnp.concatenate([oh, ov], axis=1)


# --------------------------------------------------------------------------- main
if __name__ == "__main__":
    # ParCBlock(channels=16, init_kernel_size=16, variation='default',
    #           use_pe=True, depthwise=False)
    channels = 16
    init_kernel_size = 16
    use_pe = True
    depthwise = False

    B, H, W = 2, 16, 16
    key = jax.random.PRNGKey(0)
    kh, kv, kx = jax.random.split(key, 3)
    params_h = init_parc_params(kh, channels // 2, init_kernel_size, depthwise)
    params_v = init_parc_params(kv, channels // 2, init_kernel_size, depthwise)
    x = jax.random.normal(kx, (B, channels, H, W), jnp.float32)

    ref = parc_block_ref(x, params_h, params_v, use_pe=use_pe, depthwise=depthwise)

    # 1) f32 MXU operands: tight check of the circulant-GEMM formulation.
    prep_f32 = prepare_parc_block(params_h, params_v, channels, H, W,
                                  use_pe=use_pe, depthwise=depthwise,
                                  mxu_dtype=jnp.float32)
    out_f32 = jax.block_until_ready(jax.jit(lambda a: parc_block(a, prep_f32))(x))
    np.testing.assert_allclose(np.asarray(out_f32), np.asarray(ref),
                               rtol=1e-4, atol=1e-4)

    # 2) default fast path: bf16 MXU operands, f32 accumulation (looser tolerance).
    prep = prepare_parc_block(params_h, params_v, channels, H, W,
                              use_pe=use_pe, depthwise=depthwise)
    out = jax.block_until_ready(jax.jit(lambda a: parc_block(a, prep))(x))
    np.testing.assert_allclose(np.asarray(out), np.asarray(ref),
                               rtol=2e-2, atol=5e-2)
    assert out.shape == (B, channels, H, W)

    print("KERNEL_OK")
</pallas_src>

<mosaic_0001>
module attributes {stable_mosaic.version = 11 : i64} {
  func.func @_gemm_kernel(%arg0: i32, %arg1: i32, %arg2: memref<1x32x128xf32, #tpu.memory_space<vmem>>, %arg3: memref<1x128x128xf32, #tpu.memory_space<vmem>>, %arg4: memref<1x1x128xf32, #tpu.memory_space<vmem>>, %arg5: memref<1x32x128xf32, #tpu.memory_space<vmem>>) attributes {dimension_semantics = [#tpu.dimension_semantics<parallel>, #tpu.dimension_semantics<parallel>], iteration_bounds = array<i64: 2, 1>, scalar_prefetch = 0 : i64, scratch_operands = 0 : i64, tpu.core_type = #tpu.core_type<tc>, window_params = [{transform_indices = @transform_0, window_bounds = array<i64: 1, 32, 128>}, {transform_indices = @transform_1, window_bounds = array<i64: 1, 128, 128>}, {transform_indices = @transform_2, window_bounds = array<i64: 1, 1, 128>}, {transform_indices = @transform_3, window_bounds = array<i64: 1, 32, 128>}]} {
    %c0 = arith.constant 0 : index
    %c0_0 = arith.constant 0 : index
    %c0_1 = arith.constant 0 : index
    %0 = vector.load %arg2[%c0, %c0_0, %c0_1] : memref<1x32x128xf32, #tpu.memory_space<vmem>>, vector<1x32x128xf32>
    %1 = vector.shape_cast %0 : vector<1x32x128xf32> to vector<32x128xf32>
    %c0_2 = arith.constant 0 : index
    %c0_3 = arith.constant 0 : index
    %c0_4 = arith.constant 0 : index
    %2 = vector.load %arg3[%c0_2, %c0_3, %c0_4] : memref<1x128x128xf32, #tpu.memory_space<vmem>>, vector<1x128x128xf32>
    %3 = vector.shape_cast %2 : vector<1x128x128xf32> to vector<128x128xf32>
    %cst = arith.constant dense<0.000000e+00> : vector<32x128xf32>
    %4 = tpu.matmul %1, %3, %cst {dimension_numbers = #tpu.dot_dimension_numbers<[1], [0], [0], [1], [0, 0, 1, 1], [], []>} : vector<32x128xf32>, vector<128x128xf32>, vector<32x128xf32> -> vector<32x128xf32>
    %c0_5 = arith.constant 0 : index
    %c0_6 = arith.constant 0 : index
    %c0_7 = arith.constant 0 : index
    %5 = vector.load %arg4[%c0_5, %c0_6, %c0_7] : memref<1x1x128xf32, #tpu.memory_space<vmem>>, vector<1x1x128xf32>
    %6 = vector.shape_cast %5 : vector<1x1x128xf32> to vector<1x128xf32>
    %7 = vector.broadcast %6 : vector<1x128xf32> to vector<32x128xf32>
    %8 = arith.addf %4, %7 : vector<32x128xf32>
    %c0_8 = arith.constant 0 : index
    %c0_9 = arith.constant 0 : index
    %c0_10 = arith.constant 0 : index
    %9 = vector.load %arg5[%c0_8, %c0_9, %c0_10] : memref<1x32x128xf32, #tpu.memory_space<vmem>>, vector<1x32x128xf32>
    %10 = vector.shape_cast %9 : vector<1x32x128xf32> to vector<32x128xf32>
    %11 = vector.shape_cast %8 : vector<32x128xf32> to vector<1x32x128xf32>
    tpu.vector_store %arg5[%c0_8, %c0_9, %c0_10], %11 {strides = array<i32>} : memref<1x32x128xf32, #tpu.memory_space<vmem>>, vector<1x32x128xf32>,
    return
  }
  func.func @transform_0(%arg0: i32, %arg1: i32) -> (i32, i32, i32) {
    %c0_i32 = arith.constant 0 : i32
    %c0_i32_0 = arith.constant 0 : i32
    return %arg0, %arg1, %c0_i32 : i32, i32, i32
  }
  func.func @transform_1(%arg0: i32, %arg1: i32) -> (i32, i32, i32) {
    %c0_i32 = arith.constant 0 : i32
    %c0_i32_0 = arith.constant 0 : i32
    %c0_i32_1 = arith.constant 0 : i32
    return %arg0, %c0_i32, %c0_i32_0 : i32, i32, i32
  }
  func.func @transform_2(%arg0: i32, %arg1: i32) -> (i32, i32, i32) {
    %c0_i32 = arith.constant 0 : i32
    %c0_i32_0 = arith.constant 0 : i32
    %c0_i32_1 = arith.constant 0 : i32
    return %arg0, %c0_i32, %c0_i32_0 : i32, i32, i32
  }
  func.func @transform_3(%arg0: i32, %arg1: i32) -> (i32, i32, i32) {
    %c0_i32 = arith.constant 0 : i32
    %c0_i32_0 = arith.constant 0 : i32
    return %arg0, %arg1, %c0_i32 : i32, i32, i32
  }
}

</mosaic_0001>

<llo_original>
// kernel: squeeze.2
$region0: #{squeeze.2}
  %s0 = inlined_call_operand.vmem [shape: f32[1,32,128], index: 0, kind: input, shape index: {}]
  %s1 = inlined_call_operand.vmem [shape: f32[2,16,16,8], index: 1, kind: output, shape index: {}]
  $region1: #{squeeze.2} parent=0
    #allocation0 [shape = 'u8[524288]{0}', space=vmem, size = 0x80000, scoped, tag = 'scoped mem for output reshape']
    %v2 = vld [vmem:[%s0] sm:$0xff]
    %vm3 = vcmask 130048
    %4 = vst.msk [vmem:[#allocation0] ss:$8 sm:$0xf] %vm3, %v2
    %5 = vst.msk [vmem:[#allocation0] ss:$8 sm:$0xf0] %vm3, %v2
    %s6 = scalar_lea.vmem %s0, 8
    %v7 = vld [vmem:[%s6] sm:$0xff]
    %vm8 = vcmask 130048
    %s9 = scalar_lea.vmem [#allocation0], 64
    %10 = vst.msk [vmem:[%s9] ss:$8 sm:$0xf] %vm8, %v7
    %s11 = scalar_lea.vmem [#allocation0], 64
    %12 = vst.msk [vmem:[%s11] ss:$8 sm:$0xf0] %vm8, %v7
    %s13 = scalar_lea.vmem %s0, 16
    %v14 = vld [vmem:[%s13] sm:$0xff]
    %vm15 = vcmask 130048
    %s16 = scalar_lea.vmem [#allocation0], 128
    %17 = vst.msk [vmem:[%s16] ss:$8 sm:$0xf] %vm15, %v14
    %s18 = scalar_lea.vmem [#allocation0], 128
    %19 = vst.msk [vmem:[%s18] ss:$8 sm:$0xf0] %vm15, %v14
    %s20 = scalar_lea.vmem %s0, 24
    %v21 = vld [vmem:[%s20] sm:$0xff]
    %vm22 = vcmask 130048
    %s23 = scalar_lea.vmem [#allocation0], 192
    %24 = vst.msk [vmem:[%s23] ss:$8 sm:$0xf] %vm22, %v21
    %s25 = scalar_lea.vmem [#allocation0], 192
    %26 = vst.msk [vmem:[%s25] ss:$8 sm:$0xf0] %vm22, %v21
    %s27 = scalar_lea.vmem %s0, 32
    %v28 = vld [vmem:[%s27] sm:$0xff]
    %vm29 = vcmask 130048
    %s30 = scalar_lea.vmem [#allocation0], 256
    %31 = vst.msk [vmem:[%s30] ss:$8 sm:$0xf] %vm29, %v28
    %s32 = scalar_lea.vmem [#allocation0], 256
    %33 = vst.msk [vmem:[%s32] ss:$8 sm:$0xf0] %vm29, %v28
    %s34 = scalar_lea.vmem %s0, 40
    %v35 = vld [vmem:[%s34] sm:$0xff]
    %vm36 = vcmask 130048
    %s37 = scalar_lea.vmem [#allocation0], 320
    %38 = vst.msk [vmem:[%s37] ss:$8 sm:$0xf] %vm36, %v35
    %s39 = scalar_lea.vmem [#allocation0], 320
    %40 = vst.msk [vmem:[%s39] ss:$8 sm:$0xf0] %vm36, %v35
    %s41 = scalar_lea.vmem %s0, 48
    %v42 = vld [vmem:[%s41] sm:$0xff]
    %vm43 = vcmask 130048
    %s44 = scalar_lea.vmem [#allocation0], 384
    %45 = vst.msk [vmem:[%s44] ss:$8 sm:$0xf] %vm43, %v42
    %s46 = scalar_lea.vmem [#allocation0], 384
    %47 = vst.msk [vmem:[%s46] ss:$8 sm:$0xf0] %vm43, %v42
    %s48 = scalar_lea.vmem %s0, 56
    %v49 = vld [vmem:[%s48] sm:$0xff]
    %vm50 = vcmask 130048
    %s51 = scalar_lea.vmem [#allocation0], 448
    %52 = vst.msk [vmem:[%s51] ss:$8 sm:$0xf] %vm50, %v49
    %s53 = scalar_lea.vmem [#allocation0], 448
    %54 = vst.msk [vmem:[%s53] ss:$8 sm:$0xf0] %vm50, %v49
    %s55 = scalar_lea.vmem %s0, 64
    %v56 = vld [vmem:[%s55] sm:$0xff]
    %vm57 = vcmask 130048
    %s58 = scalar_lea.vmem [#allocation0], 512
    %59 = vst.msk [vmem:[%s58] ss:$8 sm:$0xf] %vm57, %v56
    %s60 = scalar_lea.vmem [#allocation0], 512
    %61 = vst.msk [vmem:[%s60] ss:$8 sm:$0xf0] %vm57, %v56
    %s62 = scalar_lea.vmem %s0, 72
    %v63 = vld [vmem:[%s62] sm:$0xff]
    %vm64 = vcmask 130048
    %s65 = scalar_lea.vmem [#allocation0], 576
    %66 = vst.msk [vmem:[%s65] ss:$8 sm:$0xf] %vm64, %v63
    %s67 = scalar_lea.vmem [#allocation0], 576
    %68 = vst.msk [vmem:[%s67] ss:$8 sm:$0xf0] %vm64, %v63
    %s69 = scalar_lea.vmem %s0, 80
    %v70 = vld [vmem:[%s69] sm:$0xff]
    %vm71 = vcmask 130048
    %s72 = scalar_lea.vmem [#allocation0], 640
    %73 = vst.msk [vmem:[%s72] ss:$8 sm:$0xf] %vm71, %v70
    %s74 = scalar_lea.vmem [#allocation0], 640
    %75 = vst.msk [vmem:[%s74] ss:$8 sm:$0xf0] %vm71, %v70
    %s76 = scalar_lea.vmem %s0, 88
    %v77 = vld [vmem:[%s76] sm:$0xff]
    %vm78 = vcmask 130048
    %s79 = scalar_lea.vmem [#allocation0], 704
    %80 = vst.msk [vmem:[%s79] ss:$8 sm:$0xf] %vm78, %v77
    %s81 = scalar_lea.vmem [#allocation0], 704
    %82 = vst.msk [vmem:[%s81] ss:$8 sm:$0xf0] %vm78, %v77
    %s83 = scalar_lea.vmem %s0, 96
    %v84 = vld [vmem:[%s83] sm:$0xff]
    %vm85 = vcmask 130048
    %s86 = scalar_lea.vmem [#allocation0], 768
    %87 = vst.msk [vmem:[%s86] ss:$8 sm:$0xf] %vm85, %v84
    %s88 = scalar_lea.vmem [#allocation0], 768
    %89 = vst.msk [vmem:[%s88] ss:$8 sm:$0xf0] %vm85, %v84
    %s90 = scalar_lea.vmem %s0, 104
    %v91 = vld [vmem:[%s90] sm:$0xff]
    %vm92 = vcmask 130048
    %s93 = scalar_lea.vmem [#allocation0], 832
    %94 = vst.msk [vmem:[%s93] ss:$8 sm:$0xf] %vm92, %v91
    %s95 = scalar_lea.vmem [#allocation0], 832
    %96 = vst.msk [vmem:[%s95] ss:$8 sm:$0xf0] %vm92, %v91
    %s97 = scalar_lea.vmem %s0, 112
    %v98 = vld [vmem:[%s97] sm:$0xff]
    %vm99 = vcmask 130048
    %s100 = scalar_lea.vmem [#allocation0], 896
    %101 = vst.msk [vmem:[%s100] ss:$8 sm:$0xf] %vm99, %v98
    %s102 = scalar_lea.vmem [#allocation0], 896
    %103 = vst.msk [vmem:[%s102] ss:$8 sm:$0xf0] %vm99, %v98
    %s104 = scalar_lea.vmem %s0, 120
    %v105 = vld [vmem:[%s104] sm:$0xff]
    %vm106 = vcmask 130048
    %s107 = scalar_lea.vmem [#allocation0], 960
    %108 = vst.msk [vmem:[%s107] ss:$8 sm:$0xf] %vm106, %v105
    %s109 = scalar_lea.vmem [#allocation0], 960
    %110 = vst.msk [vmem:[%s109] ss:$8 sm:$0xf0] %vm106, %v105
    %v111 = vld [vmem:[%s0] sm:$0xff]
    %112 = vrot.lane.b32.xlu0 %v111, 112
    %v113 = vpop.permute.xlu0 %112
    %vm114 = vcmask 130048
    %s115 = scalar_lea.vmem [#allocation0], 1
    %116 = vst.msk [vmem:[%s115] ss:$8 sm:$0xf] %vm114, %v113
    %s117 = scalar_lea.vmem [#allocation0], 1
    %118 = vst.msk [vmem:[%s117] ss:$8 sm:$0xf0] %vm114, %v113
    %s119 = scalar_lea.vmem %s0, 8
    %v120 = vld [vmem:[%s119] sm:$0xff]
    %121 = vrot.lane.b32.xlu0 %v120, 112
    %v122 = vpop.permute.xlu0 %121
    %vm123 = vcmask 130048
    %s124 = scalar_lea.vmem [#allocation0], 65
    %125 = vst.msk [vmem:[%s124] ss:$8 sm:$0xf] %vm123, %v122
    %s126 = scalar_lea.vmem [#allocation0], 65
    %127 = vst.msk [vmem:[%s126] ss:$8 sm:$0xf0] %vm123, %v122
    %s128 = scalar_lea.vmem %s0, 16
    %v129 = vld [vmem:[%s128] sm:$0xff]
    %130 = vrot.lane.b32.xlu0 %v129, 112
    %v131 = vpop.permute.xlu0 %130
    %vm132 = vcmask 130048
    %s133 = scalar_lea.vmem [#allocation0], 129
    %134 = vst.msk [vmem:[%s133] ss:$8 sm:$0xf] %vm132, %v131
    %s135 = scalar_lea.vmem [#allocation0], 129
    %136 = vst.msk [vmem:[%s135] ss:$8 sm:$0xf0] %vm132, %v131
    %s137 = scalar_lea.vmem %s0, 24
    %v138 = vld [vmem:[%s137] sm:$0xff]
    %139 = vrot.lane.b32.xlu0 %v138, 112
    %v140 = vpop.permute.xlu0 %139
    %vm141 = vcmask 130048
    %s142 = scalar_lea.vmem [#allocation0], 193
    %143 = vst.msk [vmem:[%s142] ss:$8 sm:$0xf] %vm141, %v140
    %s144 = scalar_lea.vmem [#allocation0], 193
    %145 = vst.msk [vmem:[%s144] ss:$8 sm:$0xf0] %vm141, %v140
    %s146 = scalar_lea.vmem %s0, 32
    %v147 = vld [vmem:[%s146] sm:$0xff]
    %148 = vrot.lane.b32.xlu0 %v147, 112
    %v149 = vpop.permute.xlu0 %148
    %vm150 = vcmask 130048
    %s151 = scalar_lea.vmem [#allocation0], 257
    %152 = vst.msk [vmem:[%s151] ss:$8 sm:$0xf] %vm150, %v149
    %s153 = scalar_lea.vmem [#allocation0], 257
    %154 = vst.msk [vmem:[%s153] ss:$8 sm:$0xf0] %vm150, %v149
    %s155 = scalar_lea.vmem %s0, 40
    %v156 = vld [vmem:[%s155] sm:$0xff]
    %157 = vrot.lane.b32.xlu0 %v156, 112
    %v158 = vpop.permute.xlu0 %157
    %vm159 = vcmask 130048
    %s160 = scalar_lea.vmem [#allocation0], 321
    %161 = vst.msk [vmem:[%s160] ss:$8 sm:$0xf] %vm159, %v158
    %s162 = scalar_lea.vmem [#allocation0], 321
    %163 = vst.msk [vmem:[%s162] ss:$8 sm:$0xf0] %vm159, %v158
    %s164 = scalar_lea.vmem %s0, 48
    %v165 = vld [vmem:[%s164] sm:$0xff]
    %166 = vrot.lane.b32.xlu0 %v165, 112
    %v167 = vpop.permute.xlu0 %166
    %vm168 = vcmask 130048
    %s169 = scalar_lea.vmem [#allocation0], 385
    %170 = vst.msk [vmem:[%s169] ss:$8 sm:$0xf] %vm168, %v167
    %s171 = scalar_lea.vmem [#allocation0], 385
    %172 = vst.msk [vmem:[%s171] ss:$8 sm:$0xf0] %vm168, %v167
    %s173 = scalar_lea.vmem %s0, 56
    %v174 = vld [vmem:[%s173] sm:$0xff]
    %175 = vrot.lane.b32.xlu0 %v174, 112
    %v176 = vpop.permute.xlu0 %175
    %vm177 = vcmask 130048
    %s178 = scalar_lea.vmem [#allocation0], 449
    %179 = vst.msk [vmem:[%s178] ss:$8 sm:$0xf] %vm177, %v176
    %s180 = scalar_lea.vmem [#allocation0], 449
    %181 = vst.msk [vmem:[%s180] ss:$8 sm:$0xf0] %vm177, %v176
    %s182 = scalar_lea.vmem %s0, 64
    %v183 = vld [vmem:[%s182] sm:$0xff]
    %184 = vrot.lane.b32.xlu0 %v183, 112
    %v185 = vpop.permute.xlu0 %184
    %vm186 = vcmask 130048
    %s187 = scalar_lea.vmem [#allocation0], 513
    %188 = vst.msk [vmem:[%s187] ss:$8 sm:$0xf] %vm186, %v185
    %s189 = scalar_lea.vmem [#allocation0], 513
    %190 = vst.msk [vmem:[%s189] ss:$8 sm:$0xf0] %vm186, %v185
    %s191 = scalar_lea.vmem %s0, 72
    %v192 = vld [vmem:[%s191] sm:$0xff]
    %193 = vrot.lane.b32.xlu0 %v192, 112
    %v194 = vpop.permute.xlu0 %193
    %vm195 = vcmask 130048
    %s196 = scalar_lea.vmem [#allocation0], 577
    %197 = vst.msk [vmem:[%s196] ss:$8 sm:$0xf] %vm195, %v194
    %s198 = scalar_lea.vmem [#allocation0], 577
    %199 = vst.msk [vmem:[%s198] ss:$8 sm:$0xf0] %vm195, %v194
    %s200 = scalar_lea.vmem %s0, 80
    %v201 = vld [vmem:[%s200] sm:$0xff]
    %202 = vrot.lane.b32.xlu0 %v201, 112
    %v203 = vpop.permute.xlu0 %202
    %vm204 = vcmask 130048
    %s205 = scalar_lea.vmem [#allocation0], 641
    %206 = vst.msk [vmem:[%s205] ss:$8 sm:$0xf] %vm204, %v203
    %s207 = scalar_lea.vmem [#allocation0], 641
    %208 = vst.msk [vmem:[%s207] ss:$8 sm:$0xf0] %vm204, %v203
    %s209 = scalar_lea.vmem %s0, 88
    %v210 = vld [vmem:[%s209] sm:$0xff]
    %211 = vrot.lane.b32.xlu0 %v210, 112
    %v212 = vpop.permute.xlu0 %211
    %vm213 = vcmask 130048
    %s214 = scalar_lea.vmem [#allocation0], 705
    %215 = vst.msk [vmem:[%s214] ss:$8 sm:$0xf] %vm213, %v212
    %s216 = scalar_lea.vmem [#allocation0], 705
    %217 = vst.msk [vmem:[%s216] ss:$8 sm:$0xf0] %vm213, %v212
    %s218 = scalar_lea.vmem %s0, 96
    %v219 = vld [vmem:[%s218] sm:$0xff]
    %220 = vrot.lane.b32.xlu0 %v219, 112
    %v221 = vpop.permute.xlu0 %220
    %vm222 = vcmask 130048
    %s223 = scalar_lea.vmem [#allocation0], 769
    %224 = vst.msk [vmem:[%s223] ss:$8 sm:$0xf] %vm222, %v221
    %s225 = scalar_lea.vmem [#allocation0], 769
    %226 = vst.msk [vmem:[%s225] ss:$8 sm:$0xf0] %vm222, %v221
    %s227 = scalar_lea.vmem %s0, 104
    %v228 = vld [vmem:[%s227] sm:$0xff]
    %229 = vrot.lane.b32.xlu0 %v228, 112
    %v230 = vpop.permute.xlu0 %229
    %vm231 = vcmask 130048
    %s232 = scalar_lea.vmem [#allocation0], 833
    %233 = vst.msk [vmem:[%s232] ss:$8 sm:$0xf] %vm231, %v230
    %s234 = scalar_lea.vmem [#allocation0], 833
    %235 = vst.msk [vmem:[%s234] ss:$8 sm:$0xf0] %vm231, %v230
    %s236 = scalar_lea.vmem %s0, 112
    %v237 = vld [vmem:[%s236] sm:$0xff]
    %238 = vrot.lane.b32.xlu0 %v237, 112
    %v239 = vpop.permute.xlu0 %238
    %vm240 = vcmask 130048
    %s241 = scalar_lea.vmem [#allocation0], 897
    %242 = vst.msk [vmem:[%s241] ss:$8 sm:$0xf] %vm240, %v239
    %s243 = scalar_lea.vmem [#allocation0], 897
    %244 = vst.msk [vmem:[%s243] ss:$8 sm:$0xf0] %vm240, %v239
    %s245 = scalar_lea.vmem %s0, 120
    %v246 = vld [vmem:[%s245] sm:$0xff]
    %247 = vrot.lane.b32.xlu0 %v246, 112
    %v248 = vpop.permute.xlu0 %247
    %vm249 = vcmask 130048
    %s250 = scalar_lea.vmem [#allocation0], 961
    %251 = vst.msk [vmem:[%s250] ss:$8 sm:$0xf] %vm249, %v248
    %s252 = scalar_lea.vmem [#allocation0], 961
    %253 = vst.msk [vmem:[%s252] ss:$8 sm:$0xf0] %vm249, %v248
    %s255 = sshllo.u32 0, 2
    %v257 = vld [vmem:[#allocation0] sm:%s255]
    %s258 = sshllo.u32 0, 2
    %259 = vst [vmem:[%s1] sm:%s258] %v257
    %s260 = scalar_lea.vmem [#allocation0], 8
    %v261 = vld [vmem:[%s260] sm:%s255]
    %s262 = sshllo.u32 0, 2
    %s263 = scalar_lea.vmem %s1, 2
    %264 = vst [vmem:[%s263] sm:%s262] %v261
    %s265 = scalar_lea.vmem [#allocation0], 16
    %v266 = vld [vmem:[%s265] sm:%s255]
    %s267 = sshllo.u32 0, 2
    %s268 = smul.addr 2, 2
    %s269 = scalar_lea.vmem %s1, %s268
    %270 = vst [vmem:[%s269] sm:%s267] %v266
    %s271 = scalar_lea.vmem [#allocation0], 24
    %v272 = vld [vmem:[%s271] sm:%s255]
    %s273 = sshllo.u32 0, 2
    %s274 = smul.addr 2, 3
    %s275 = scalar_lea.vmem %s1, %s274
    %276 = vst [vmem:[%s275] sm:%s273] %v272
    %s277 = scalar_lea.vmem [#allocation0], 32
    %v278 = vld [vmem:[%s277] sm:%s255]
    %s279 = sshllo.u32 0, 2
    %s280 = smul.addr 2, 4
    %s281 = scalar_lea.vmem %s1, %s280
    %282 = vst [vmem:[%s281] sm:%s279] %v278
    %s283 = scalar_lea.vmem [#allocation0], 40
    %v284 = vld [vmem:[%s283] sm:%s255]
    %s285 = sshllo.u32 0, 2
    %s286 = smul.addr 2, 5
    %s287 = scalar_lea.vmem %s1, %s286
    %288 = vst [vmem:[%s287] sm:%s285] %v284
    %s289 = scalar_lea.vmem [#allocation0], 48
    %v290 = vld [vmem:[%s289] sm:%s255]
    %s291 = sshllo.u32 0, 2
    %s292 = smul.addr 2, 6
    %s293 = scalar_lea.vmem %s1, %s292
    %294 = vst [vmem:[%s293] sm:%s291] %v290
    %s295 = scalar_lea.vmem [#allocation0], 56
    %v296 = vld [vmem:[%s295] sm:%s255]
    %s297 = sshllo.u32 0, 2
    %s298 = smul.addr 2, 7
    %s299 = scalar_lea.vmem %s1, %s298
    %300 = vst [vmem:[%s299] sm:%s297] %v296
    %s301 = scalar_lea.vmem [#allocation0], 64
    %v302 = vld [vmem:[%s301] sm:%s255]
    %s303 = sshllo.u32 0, 2
    %s304 = smul.addr 2, 8
    %s305 = scalar_lea.vmem %s1, %s304
    %306 = vst [vmem:[%s305] sm:%s303] %v302
    %s307 = scalar_lea.vmem [#allocation0], 72
    %v308 = vld [vmem:[%s307] sm:%s255]
    %s309 = sshllo.u32 0, 2
    %s310 = smul.addr 2, 9
    %s311 = scalar_lea.vmem %s1, %s310
    %312 = vst [vmem:[%s311] sm:%s309] %v308
    %s313 = scalar_lea.vmem [#allocation0], 80
    %v314 = vld [vmem:[%s313] sm:%s255]
    %s315 = sshllo.u32 0, 2
    %s316 = smul.addr 2, 10
    %s317 = scalar_lea.vmem %s1, %s316
    %318 = vst [vmem:[%s317] sm:%s315] %v314
    %s319 = scalar_lea.vmem [#allocation0], 88
    %v320 = vld [vmem:[%s319] sm:%s255]
    %s321 = sshllo.u32 0, 2
    %s322 = smul.addr 2, 11
    %s323 = scalar_lea.vmem %s1, %s322
    %324 = vst [vmem:[%s323] sm:%s321] %v320
    %s325 = scalar_lea.vmem [#allocation0], 96
    %v326 = vld [vmem:[%s325] sm:%s255]
    %s327 = sshllo.u32 0, 2
    %s328 = smul.addr 2, 12
    %s329 = scalar_lea.vmem %s1, %s328
    %330 = vst [vmem:[%s329] sm:%s327] %v326
    %s331 = scalar_lea.vmem [#allocation0], 104
    %v332 = vld [vmem:[%s331] sm:%s255]
    %s333 = sshllo.u32 0, 2
    %s334 = smul.addr 2, 13
    %s335 = scalar_lea.vmem %s1, %s334
    %336 = vst [vmem:[%s335] sm:%s333] %v332
    %s337 = scalar_lea.vmem [#allocation0], 112
    %v338 = vld [vmem:[%s337] sm:%s255]
    %s339 = sshllo.u32 0, 2
    %s340 = smul.addr 2, 14
    %s341 = scalar_lea.vmem %s1, %s340
    %342 = vst [vmem:[%s341] sm:%s339] %v338
    %s343 = scalar_lea.vmem [#allocation0], 120
    %v344 = vld [vmem:[%s343] sm:%s255]
    %s345 = sshllo.u32 0, 2
    %s346 = smul.addr 2, 15
    %s347 = scalar_lea.vmem %s1, %s346
    %348 = vst [vmem:[%s347] sm:%s345] %v344
    %s349 = scalar_lea.vmem [#allocation0], 128
    %v350 = vld [vmem:[%s349] sm:%s255]
    %s351 = sshllo.u32 0, 2
    %s352 = smul.addr 2, 16
    %s353 = scalar_lea.vmem %s1, %s352
    %354 = vst [vmem:[%s353] sm:%s351] %v350
    %s355 = scalar_lea.vmem [#allocation0], 136
    %v356 = vld [vmem:[%s355] sm:%s255]
    %s357 = sshllo.u32 0, 2
    %s358 = smul.addr 2, 17
    %s359 = scalar_lea.vmem %s1, %s358
    %360 = vst [vmem:[%s359] sm:%s357] %v356
    %s361 = scalar_lea.vmem [#allocation0], 144
    %v362 = vld [vmem:[%s361] sm:%s255]
    %s363 = sshllo.u32 0, 2
    %s364 = smul.addr 2, 18
    %s365 = scalar_lea.vmem %s1, %s364
    %366 = vst [vmem:[%s365] sm:%s363] %v362
    %s367 = scalar_lea.vmem [#allocation0], 152
    %v368 = vld [vmem:[%s367] sm:%s255]
    %s369 = sshllo.u32 0, 2
    %s370 = smul.addr 2, 19
    %s371 = scalar_lea.vmem %s1, %s370
    %372 = vst [vmem:[%s371] sm:%s369] %v368
    %s373 = scalar_lea.vmem [#allocation0], 160
    %v374 = vld [vmem:[%s373] sm:%s255]
    %s375 = sshllo.u32 0, 2
    %s376 = smul.addr 2, 20
    %s377 = scalar_lea.vmem %s1, %s376
    %378 = vst [vmem:[%s377] sm:%s375] %v374
    %s379 = scalar_lea.vmem [#allocation0], 168
    %v380 = vld [vmem:[%s379] sm:%s255]
    %s381 = sshllo.u32 0, 2
    %s382 = smul.addr 2, 21
    %s383 = scalar_lea.vmem %s1, %s382
    %384 = vst [vmem:[%s383] sm:%s381] %v380
    %s385 = scalar_lea.vmem [#allocation0], 176
    %v386 = vld [vmem:[%s385] sm:%s255]
    %s387 = sshllo.u32 0, 2
    %s388 = smul.addr 2, 22
    %s389 = scalar_lea.vmem %s1, %s388
    %390 = vst [vmem:[%s389] sm:%s387] %v386
    %s391 = scalar_lea.vmem [#allocation0], 184
    %v392 = vld [vmem:[%s391] sm:%s255]
    %s393 = sshllo.u32 0, 2
    %s394 = smul.addr 2, 23
    %s395 = scalar_lea.vmem %s1, %s394
    %396 = vst [vmem:[%s395] sm:%s393] %v392
    %s397 = scalar_lea.vmem [#allocation0], 192
    %v398 = vld [vmem:[%s397] sm:%s255]
    %s399 = sshllo.u32 0, 2
    %s400 = smul.addr 2, 24
    %s401 = scalar_lea.vmem %s1, %s400
    %402 = vst [vmem:[%s401] sm:%s399] %v398
    %s403 = scalar_lea.vmem [#allocation0], 200
    %v404 = vld [vmem:[%s403] sm:%s255]
    %s405 = sshllo.u32 0, 2
    %s406 = smul.addr 2, 25
    %s407 = scalar_lea.vmem %s1, %s406
    %408 = vst [vmem:[%s407] sm:%s405] %v404
    %s409 = scalar_lea.vmem [#allocation0], 208
    %v410 = vld [vmem:[%s409] sm:%s255]
    %s411 = sshllo.u32 0, 2
    %s412 = smul.addr 2, 26
    %s413 = scalar_lea.vmem %s1, %s412
    %414 = vst [vmem:[%s413] sm:%s411] %v410
    %s415 = scalar_lea.vmem [#allocation0], 216
    %v416 = vld [vmem:[%s415] sm:%s255]
    %s417 = sshllo.u32 0, 2
    %s418 = smul.addr 2, 27
    %s419 = scalar_lea.vmem %s1, %s418
    %420 = vst [vmem:[%s419] sm:%s417] %v416
    %s421 = scalar_lea.vmem [#allocation0], 224
    %v422 = vld [vmem:[%s421] sm:%s255]
    %s423 = sshllo.u32 0, 2
    %s424 = smul.addr 2, 28
    %s425 = scalar_lea.vmem %s1, %s424
    %426 = vst [vmem:[%s425] sm:%s423] %v422
    %s427 = scalar_lea.vmem [#allocation0], 232
    %v428 = vld [vmem:[%s427] sm:%s255]
    %s429 = sshllo.u32 0, 2
    %s430 = smul.addr 2, 29
    %s431 = scalar_lea.vmem %s1, %s430
    %432 = vst [vmem:[%s431] sm:%s429] %v428
    %s433 = scalar_lea.vmem [#allocation0], 240
    %v434 = vld [vmem:[%s433] sm:%s255]
    %s435 = sshllo.u32 0, 2
    %s436 = smul.addr 2, 30
    %s437 = scalar_lea.vmem %s1, %s436
    %438 = vst [vmem:[%s437] sm:%s435] %v434
    %s439 = scalar_lea.vmem [#allocation0], 248
    %v440 = vld [vmem:[%s439] sm:%s255]
    %s441 = sshllo.u32 0, 2
    %s442 = smul.addr 2, 31
    %s443 = scalar_lea.vmem %s1, %s442
    %444 = vst [vmem:[%s443] sm:%s441] %v440
    %s445 = scalar_lea.vmem [#allocation0], 256
    %v446 = vld [vmem:[%s445] sm:%s255]
    %s447 = sshllo.u32 0, 2
    %s448 = smul.addr 2, 32
    %s449 = scalar_lea.vmem %s1, %s448
    %450 = vst [vmem:[%s449] sm:%s447] %v446
    %s451 = scalar_lea.vmem [#allocation0], 264
    %v452 = vld [vmem:[%s451] sm:%s255]
    %s453 = sshllo.u32 0, 2
    %s454 = smul.addr 2, 33
    %s455 = scalar_lea.vmem %s1, %s454
    %456 = vst [vmem:[%s455] sm:%s453] %v452
    %s457 = scalar_lea.vmem [#allocation0], 272
    %v458 = vld [vmem:[%s457] sm:%s255]
    %s459 = sshllo.u32 0, 2
    %s460 = smul.addr 2, 34
    %s461 = scalar_lea.vmem %s1, %s460
    %462 = vst [vmem:[%s461] sm:%s459] %v458
    %s463 = scalar_lea.vmem [#allocation0], 280
    %v464 = vld [vmem:[%s463] sm:%s255]
    %s465 = sshllo.u32 0, 2
    %s466 = smul.addr 2, 35
    %s467 = scalar_lea.vmem %s1, %s466
    %468 = vst [vmem:[%s467] sm:%s465] %v464
    %s469 = scalar_lea.vmem [#allocation0], 288
    %v470 = vld [vmem:[%s469] sm:%s255]
    %s471 = sshllo.u32 0, 2
    %s472 = smul.addr 2, 36
    %s473 = scalar_lea.vmem %s1, %s472
    %474 = vst [vmem:[%s473] sm:%s471] %v470
    %s475 = scalar_lea.vmem [#allocation0], 296
    %v476 = vld [vmem:[%s475] sm:%s255]
    %s477 = sshllo.u32 0, 2
    %s478 = smul.addr 2, 37
    %s479 = scalar_lea.vmem %s1, %s478
    %480 = vst [vmem:[%s479] sm:%s477] %v476
    %s481 = scalar_lea.vmem [#allocation0], 304
    %v482 = vld [vmem:[%s481] sm:%s255]
    %s483 = sshllo.u32 0, 2
    %s484 = smul.addr 2, 38
    %s485 = scalar_lea.vmem %s1, %s484
    %486 = vst [vmem:[%s485] sm:%s483] %v482
    %s487 = scalar_lea.vmem [#allocation0], 312
    %v488 = vld [vmem:[%s487] sm:%s255]
    %s489 = sshllo.u32 0, 2
    %s490 = smul.addr 2, 39
    %s491 = scalar_lea.vmem %s1, %s490
    %492 = vst [vmem:[%s491] sm:%s489] %v488
    %s493 = scalar_lea.vmem [#allocation0], 320
    %v494 = vld [vmem:[%s493] sm:%s255]
    %s495 = sshllo.u32 0, 2
    %s496 = smul.addr 2, 40
    %s497 = scalar_lea.vmem %s1, %s496
    %498 = vst [vmem:[%s497] sm:%s495] %v494
    %s499 = scalar_lea.vmem [#allocation0], 328
    %v500 = vld [vmem:[%s499] sm:%s255]
    %s501 = sshllo.u32 0, 2
    %s502 = smul.addr 2, 41
    %s503 = scalar_lea.vmem %s1, %s502
    %504 = vst [vmem:[%s503] sm:%s501] %v500
    %s505 = scalar_lea.vmem [#allocation0], 336
    %v506 = vld [vmem:[%s505] sm:%s255]
    %s507 = sshllo.u32 0, 2
    %s508 = smul.addr 2, 42
    %s509 = scalar_lea.vmem %s1, %s508
    %510 = vst [vmem:[%s509] sm:%s507] %v506
    %s511 = scalar_lea.vmem [#allocation0], 344
    %v512 = vld [vmem:[%s511] sm:%s255]
    %s513 = sshllo.u32 0, 2
    %s514 = smul.addr 2, 43
    %s515 = scalar_lea.vmem %s1, %s514
    %516 = vst [vmem:[%s515] sm:%s513] %v512
    %s517 = scalar_lea.vmem [#allocation0], 352
    %v518 = vld [vmem:[%s517] sm:%s255]
    %s519 = sshllo.u32 0, 2
    %s520 = smul.addr 2, 44
    %s521 = scalar_lea.vmem %s1, %s520
    %522 = vst [vmem:[%s521] sm:%s519] %v518
    %s523 = scalar_lea.vmem [#allocation0], 360
    %v524 = vld [vmem:[%s523] sm:%s255]
    %s525 = sshllo.u32 0, 2
    %s526 = smul.addr 2, 45
    %s527 = scalar_lea.vmem %s1, %s526
    %528 = vst [vmem:[%s527] sm:%s525] %v524
    %s529 = scalar_lea.vmem [#allocation0], 368
    %v530 = vld [vmem:[%s529] sm:%s255]
    %s531 = sshllo.u32 0, 2
    %s532 = smul.addr 2, 46
    %s533 = scalar_lea.vmem %s1, %s532
    %534 = vst [vmem:[%s533] sm:%s531] %v530
    %s535 = scalar_lea.vmem [#allocation0], 376
    %v536 = vld [vmem:[%s535] sm:%s255]
    %s537 = sshllo.u32 0, 2
    %s538 = smul.addr 2, 47
    %s539 = scalar_lea.vmem %s1, %s538
    %540 = vst [vmem:[%s539] sm:%s537] %v536
    %s541 = scalar_lea.vmem [#allocation0], 384
    %v542 = vld [vmem:[%s541] sm:%s255]
    %s543 = sshllo.u32 0, 2
    %s544 = smul.addr 2, 48
    %s545 = scalar_lea.vmem %s1, %s544
    %546 = vst [vmem:[%s545] sm:%s543] %v542
    %s547 = scalar_lea.vmem [#allocation0], 392
    %v548 = vld [vmem:[%s547] sm:%s255]
    %s549 = sshllo.u32 0, 2
    %s550 = smul.addr 2, 49
    %s551 = scalar_lea.vmem %s1, %s550
    %552 = vst [vmem:[%s551] sm:%s549] %v548
    %s553 = scalar_lea.vmem [#allocation0], 400
    %v554 = vld [vmem:[%s553] sm:%s255]
    %s555 = sshllo.u32 0, 2
    %s556 = smul.addr 2, 50
    %s557 = scalar_lea.vmem %s1, %s556
    %558 = vst [vmem:[%s557] sm:%s555] %v554
    %s559 = scalar_lea.vmem [#allocation0], 408
    %v560 = vld [vmem:[%s559] sm:%s255]
    %s561 = sshllo.u32 0, 2
    %s562 = smul.addr 2, 51
    %s563 = scalar_lea.vmem %s1, %s562
    %564 = vst [vmem:[%s563] sm:%s561] %v560
    %s565 = scalar_lea.vmem [#allocation0], 416
    %v566 = vld [vmem:[%s565] sm:%s255]
    %s567 = sshllo.u32 0, 2
    %s568 = smul.addr 2, 52
    %s569 = scalar_lea.vmem %s1, %s568
    %570 = vst [vmem:[%s569] sm:%s567] %v566
    %s571 = scalar_lea.vmem [#allocation0], 424
    %v572 = vld [vmem:[%s571] sm:%s255]
    %s573 = sshllo.u32 0, 2
    %s574 = smul.addr 2, 53
    %s575 = scalar_lea.vmem %s1, %s574
    %576 = vst [vmem:[%s575] sm:%s573] %v572
    %s577 = scalar_lea.vmem [#allocation0], 432
    %v578 = vld [vmem:[%s577] sm:%s255]
    %s579 = sshllo.u32 0, 2
    %s580 = smul.addr 2, 54
    %s581 = scalar_lea.vmem %s1, %s580
    %582 = vst [vmem:[%s581] sm:%s579] %v578
    %s583 = scalar_lea.vmem [#allocation0], 440
    %v584 = vld [vmem:[%s583] sm:%s255]
    %s585 = sshllo.u32 0, 2
    %s586 = smul.addr 2, 55
    %s587 = scalar_lea.vmem %s1, %s586
    %588 = vst [vmem:[%s587] sm:%s585] %v584
    %s589 = scalar_lea.vmem [#allocation0], 448
    %v590 = vld [vmem:[%s589] sm:%s255]
    %s591 = sshllo.u32 0, 2
    %s592 = smul.addr 2, 56
    %s593 = scalar_lea.vmem %s1, %s592
    %594 = vst [vmem:[%s593] sm:%s591] %v590
    %s595 = scalar_lea.vmem [#allocation0], 456
    %v596 = vld [vmem:[%s595] sm:%s255]
    %s597 = sshllo.u32 0, 2
    %s598 = smul.addr 2, 57
    %s599 = scalar_lea.vmem %s1, %s598
    %600 = vst [vmem:[%s599] sm:%s597] %v596
    %s601 = scalar_lea.vmem [#allocation0], 464
    %v602 = vld [vmem:[%s601] sm:%s255]
    %s603 = sshllo.u32 0, 2
    %s604 = smul.addr 2, 58
    %s605 = scalar_lea.vmem %s1, %s604
    %606 = vst [vmem:[%s605] sm:%s603] %v602
    %s607 = scalar_lea.vmem [#allocation0], 472
    %v608 = vld [vmem:[%s607] sm:%s255]
    %s609 = sshllo.u32 0, 2
    %s610 = smul.addr 2, 59
    %s611 = scalar_lea.vmem %s1, %s610
    %612 = vst [vmem:[%s611] sm:%s609] %v608
    %s613 = scalar_lea.vmem [#allocation0], 480
    %v614 = vld [vmem:[%s613] sm:%s255]
    %s615 = sshllo.u32 0, 2
    %s616 = smul.addr 2, 60
    %s617 = scalar_lea.vmem %s1, %s616
    %618 = vst [vmem:[%s617] sm:%s615] %v614
    %s619 = scalar_lea.vmem [#allocation0], 488
    %v620 = vld [vmem:[%s619] sm:%s255]
    %s621 = sshllo.u32 0, 2
    %s622 = smul.addr 2, 61
    %s623 = scalar_lea.vmem %s1, %s622
    %624 = vst [vmem:[%s623] sm:%s621] %v620
    %s625 = scalar_lea.vmem [#allocation0], 496
    %v626 = vld [vmem:[%s625] sm:%s255]
    %s627 = sshllo.u32 0, 2
    %s628 = smul.addr 2, 62
    %s629 = scalar_lea.vmem %s1, %s628
    %630 = vst [vmem:[%s629] sm:%s627] %v626
    %s631 = scalar_lea.vmem [#allocation0], 504
    %v632 = vld [vmem:[%s631] sm:%s255]
    %s633 = sshllo.u32 0, 2
    %s634 = smul.addr 2, 63
    %s635 = scalar_lea.vmem %s1, %s634
    %636 = vst [vmem:[%s635] sm:%s633] %v632
    %s637 = scalar_lea.vmem [#allocation0], 512
    %v638 = vld [vmem:[%s637] sm:%s255]
    %s639 = sshllo.u32 0, 2
    %s640 = smul.addr 2, 64
    %s641 = scalar_lea.vmem %s1, %s640
    %642 = vst [vmem:[%s641] sm:%s639] %v638
    %s643 = scalar_lea.vmem [#allocation0], 520
    %v644 = vld [vmem:[%s643] sm:%s255]
    %s645 = sshllo.u32 0, 2
    %s646 = smul.addr 2, 65
    %s647 = scalar_lea.vmem %s1, %s646
    %648 = vst [vmem:[%s647] sm:%s645] %v644
    %s649 = scalar_lea.vmem [#allocation0], 528
    %v650 = vld [vmem:[%s649] sm:%s255]
    %s651 = sshllo.u32 0, 2
    %s652 = smul.addr 2, 66
    %s653 = scalar_lea.vmem %s1, %s652
    %654 = vst [vmem:[%s653] sm:%s651] %v650
    %s655 = scalar_lea.vmem [#allocation0], 536
    %v656 = vld [vmem:[%s655] sm:%s255]
    %s657 = sshllo.u32 0, 2
    %s658 = smul.addr 2, 67
    %s659 = scalar_lea.vmem %s1, %s658
    %660 = vst [vmem:[%s659] sm:%s657] %v656
    %s661 = scalar_lea.vmem [#allocation0], 544
    %v662 = vld [vmem:[%s661] sm:%s255]
    %s663 = sshllo.u32 0, 2
    %s664 = smul.addr 2, 68
    %s665 = scalar_lea.vmem %s1, %s664
    %666 = vst [vmem:[%s665] sm:%s663] %v662
    %s667 = scalar_lea.vmem [#allocation0], 552
    %v668 = vld [vmem:[%s667] sm:%s255]
    %s669 = sshllo.u32 0, 2
    %s670 = smul.addr 2, 69
    %s671 = scalar_lea.vmem %s1, %s670
    %672 = vst [vmem:[%s671] sm:%s669] %v668
    %s673 = scalar_lea.vmem [#allocation0], 560
    %v674 = vld [vmem:[%s673] sm:%s255]
    %s675 = sshllo.u32 0, 2
    %s676 = smul.addr 2, 70
    %s677 = scalar_lea.vmem %s1, %s676
    %678 = vst [vmem:[%s677] sm:%s675] %v674
    %s679 = scalar_lea.vmem [#allocation0], 568
    %v680 = vld [vmem:[%s679] sm:%s255]
    %s681 = sshllo.u32 0, 2
    %s682 = smul.addr 2, 71
    %s683 = scalar_lea.vmem %s1, %s682
    %684 = vst [vmem:[%s683] sm:%s681] %v680
    %s685 = scalar_lea.vmem [#allocation0], 576
    %v686 = vld [vmem:[%s685] sm:%s255]
    %s687 = sshllo.u32 0, 2
    %s688 = smul.addr 2, 72
    %s689 = scalar_lea.vmem %s1, %s688
    %690 = vst [vmem:[%s689] sm:%s687] %v686
    %s691 = scalar_lea.vmem [#allocation0], 584
    %v692 = vld [vmem:[%s691] sm:%s255]
    %s693 = sshllo.u32 0, 2
    %s694 = smul.addr 2, 73
    %s695 = scalar_lea.vmem %s1, %s694
    %696 = vst [vmem:[%s695] sm:%s693] %v692
    %s697 = scalar_lea.vmem [#allocation0], 592
    %v698 = vld [vmem:[%s697] sm:%s255]
    %s699 = sshllo.u32 0, 2
    %s700 = smul.addr 2, 74
    %s701 = scalar_lea.vmem %s1, %s700
    %702 = vst [vmem:[%s701] sm:%s699] %v698
    %s703 = scalar_lea.vmem [#allocation0], 600
    %v704 = vld [vmem:[%s703] sm:%s255]
    %s705 = sshllo.u32 0, 2
    %s706 = smul.addr 2, 75
    %s707 = scalar_lea.vmem %s1, %s706
    %708 = vst [vmem:[%s707] sm:%s705] %v704
    %s709 = scalar_lea.vmem [#allocation0], 608
    %v710 = vld [vmem:[%s709] sm:%s255]
    %s711 = sshllo.u32 0, 2
    %s712 = smul.addr 2, 76
    %s713 = scalar_lea.vmem %s1, %s712
    %714 = vst [vmem:[%s713] sm:%s711] %v710
    %s715 = scalar_lea.vmem [#allocation0], 616
    %v716 = vld [vmem:[%s715] sm:%s255]
    %s717 = sshllo.u32 0, 2
    %s718 = smul.addr 2, 77
    %s719 = scalar_lea.vmem %s1, %s718
    %720 = vst [vmem:[%s719] sm:%s717] %v716
    %s721 = scalar_lea.vmem [#allocation0], 624
    %v722 = vld [vmem:[%s721] sm:%s255]
    %s723 = sshllo.u32 0, 2
    %s724 = smul.addr 2, 78
    %s725 = scalar_lea.vmem %s1, %s724
    %726 = vst [vmem:[%s725] sm:%s723] %v722
    %s727 = scalar_lea.vmem [#allocation0], 632
    %v728 = vld [vmem:[%s727] sm:%s255]
    %s729 = sshllo.u32 0, 2
    %s730 = smul.addr 2, 79
    %s731 = scalar_lea.vmem %s1, %s730
    %732 = vst [vmem:[%s731] sm:%s729] %v728
    %s733 = scalar_lea.vmem [#allocation0], 640
    %v734 = vld [vmem:[%s733] sm:%s255]
    %s735 = sshllo.u32 0, 2
    %s736 = smul.addr 2, 80
    %s737 = scalar_lea.vmem %s1, %s736
    %738 = vst [vmem:[%s737] sm:%s735] %v734
    %s739 = scalar_lea.vmem [#allocation0], 648
    %v740 = vld [vmem:[%s739] sm:%s255]
    %s741 = sshllo.u32 0, 2
    %s742 = smul.addr 2, 81
    %s743 = scalar_lea.vmem %s1, %s742
    %744 = vst [vmem:[%s743] sm:%s741] %v740
    %s745 = scalar_lea.vmem [#allocation0], 656
    %v746 = vld [vmem:[%s745] sm:%s255]
    %s747 = sshllo.u32 0, 2
    %s748 = smul.addr 2, 82
    %s749 = scalar_lea.vmem %s1, %s748
    %750 = vst [vmem:[%s749] sm:%s747] %v746
    %s751 = scalar_lea.vmem [#allocation0], 664
    %v752 = vld [vmem:[%s751] sm:%s255]
    %s753 = sshllo.u32 0, 2
    %s754 = smul.addr 2, 83
    %s755 = scalar_lea.vmem %s1, %s754
    %756 = vst [vmem:[%s755] sm:%s753] %v752
    %s757 = scalar_lea.vmem [#allocation0], 672
    %v758 = vld [vmem:[%s757] sm:%s255]
    %s759 = sshllo.u32 0, 2
    %s760 = smul.addr 2, 84
    %s761 = scalar_lea.vmem %s1, %s760
    %762 = vst [vmem:[%s761] sm:%s759] %v758
    %s763 = scalar_lea.vmem [#allocation0], 680
    %v764 = vld [vmem:[%s763] sm:%s255]
    %s765 = sshllo.u32 0, 2
    %s766 = smul.addr 2, 85
    %s767 = scalar_lea.vmem %s1, %s766
    %768 = vst [vmem:[%s767] sm:%s765] %v764
    %s769 = scalar_lea.vmem [#allocation0], 688
    %v770 = vld [vmem:[%s769] sm:%s255]
    %s771 = sshllo.u32 0, 2
    %s772 = smul.addr 2, 86
    %s773 = scalar_lea.vmem %s1, %s772
    %774 = vst [vmem:[%s773] sm:%s771] %v770
    %s775 = scalar_lea.vmem [#allocation0], 696
    %v776 = vld [vmem:[%s775] sm:%s255]
    %s777 = sshllo.u32 0, 2
    %s778 = smul.addr 2, 87
    %s779 = scalar_lea.vmem %s1, %s778
    %780 = vst [vmem:[%s779] sm:%s777] %v776
    %s781 = scalar_lea.vmem [#allocation0], 704
    %v782 = vld [vmem:[%s781] sm:%s255]
    %s783 = sshllo.u32 0, 2
    %s784 = smul.addr 2, 88
    %s785 = scalar_lea.vmem %s1, %s784
    %786 = vst [vmem:[%s785] sm:%s783] %v782
    %s787 = scalar_lea.vmem [#allocation0], 712
    %v788 = vld [vmem:[%s787] sm:%s255]
    %s789 = sshllo.u32 0, 2
    %s790 = smul.addr 2, 89
    %s791 = scalar_lea.vmem %s1, %s790
    %792 = vst [vmem:[%s791] sm:%s789] %v788
    %s793 = scalar_lea.vmem [#allocation0], 720
    %v794 = vld [vmem:[%s793] sm:%s255]
    %s795 = sshllo.u32 0, 2
    %s796 = smul.addr 2, 90
    %s797 = scalar_lea.vmem %s1, %s796
    %798 = vst [vmem:[%s797] sm:%s795] %v794
    %s799 = scalar_lea.vmem [#allocation0], 728
    %v800 = vld [vmem:[%s799] sm:%s255]
    %s801 = sshllo.u32 0, 2
    %s802 = smul.addr 2, 91
    %s803 = scalar_lea.vmem %s1, %s802
    %804 = vst [vmem:[%s803] sm:%s801] %v800
    %s805 = scalar_lea.vmem [#allocation0], 736
    %v806 = vld [vmem:[%s805] sm:%s255]
    %s807 = sshllo.u32 0, 2
    %s808 = smul.addr 2, 92
    %s809 = scalar_lea.vmem %s1, %s808
    %810 = vst [vmem:[%s809] sm:%s807] %v806
    %s811 = scalar_lea.vmem [#allocation0], 744
    %v812 = vld [vmem:[%s811] sm:%s255]
    %s813 = sshllo.u32 0, 2
    %s814 = smul.addr 2, 93
    %s815 = scalar_lea.vmem %s1, %s814
    %816 = vst [vmem:[%s815] sm:%s813] %v812
    %s817 = scalar_lea.vmem [#allocation0], 752
    %v818 = vld [vmem:[%s817] sm:%s255]
    %s819 = sshllo.u32 0, 2
    %s820 = smul.addr 2, 94
    %s821 = scalar_lea.vmem %s1, %s820
    %822 = vst [vmem:[%s821] sm:%s819] %v818
    %s823 = scalar_lea.vmem [#allocation0], 760
    %v824 = vld [vmem:[%s823] sm:%s255]
    %s825 = sshllo.u32 0, 2
    %s826 = smul.addr 2, 95
    %s827 = scalar_lea.vmem %s1, %s826
    %828 = vst [vmem:[%s827] sm:%s825] %v824
    %s829 = scalar_lea.vmem [#allocation0], 768
    %v830 = vld [vmem:[%s829] sm:%s255]
    %s831 = sshllo.u32 0, 2
    %s832 = smul.addr 2, 96
    %s833 = scalar_lea.vmem %s1, %s832
    %834 = vst [vmem:[%s833] sm:%s831] %v830
    %s835 = scalar_lea.vmem [#allocation0], 776
    %v836 = vld [vmem:[%s835] sm:%s255]
    %s837 = sshllo.u32 0, 2
    %s838 = smul.addr 2, 97
    %s839 = scalar_lea.vmem %s1, %s838
    %840 = vst [vmem:[%s839] sm:%s837] %v836
    %s841 = scalar_lea.vmem [#allocation0], 784
    %v842 = vld [vmem:[%s841] sm:%s255]
    %s843 = sshllo.u32 0, 2
    %s844 = smul.addr 2, 98
    %s845 = scalar_lea.vmem %s1, %s844
    %846 = vst [vmem:[%s845] sm:%s843] %v842
    %s847 = scalar_lea.vmem [#allocation0], 792
    %v848 = vld [vmem:[%s847] sm:%s255]
    %s849 = sshllo.u32 0, 2
    %s850 = smul.addr 2, 99
    %s851 = scalar_lea.vmem %s1, %s850
    %852 = vst [vmem:[%s851] sm:%s849] %v848
    %s853 = scalar_lea.vmem [#allocation0], 800
    %v854 = vld [vmem:[%s853] sm:%s255]
    %s855 = sshllo.u32 0, 2
    %s856 = smul.addr 2, 100
    %s857 = scalar_lea.vmem %s1, %s856
    %858 = vst [vmem:[%s857] sm:%s855] %v854
    %s859 = scalar_lea.vmem [#allocation0], 808
    %v860 = vld [vmem:[%s859] sm:%s255]
    %s861 = sshllo.u32 0, 2
    %s862 = smul.addr 2, 101
    %s863 = scalar_lea.vmem %s1, %s862
    %864 = vst [vmem:[%s863] sm:%s861] %v860
    %s865 = scalar_lea.vmem [#allocation0], 816
    %v866 = vld [vmem:[%s865] sm:%s255]
    %s867 = sshllo.u32 0, 2
    %s868 = smul.addr 2, 102
    %s869 = scalar_lea.vmem %s1, %s868
    %870 = vst [vmem:[%s869] sm:%s867] %v866
    %s871 = scalar_lea.vmem [#allocation0], 824
    %v872 = vld [vmem:[%s871] sm:%s255]
    %s873 = sshllo.u32 0, 2
    %s874 = smul.addr 2, 103
    %s875 = scalar_lea.vmem %s1, %s874
    %876 = vst [vmem:[%s875] sm:%s873] %v872
    %s877 = scalar_lea.vmem [#allocation0], 832
    %v878 = vld [vmem:[%s877] sm:%s255]
    %s879 = sshllo.u32 0, 2
    %s880 = smul.addr 2, 104
    %s881 = scalar_lea.vmem %s1, %s880
    %882 = vst [vmem:[%s881] sm:%s879] %v878
    %s883 = scalar_lea.vmem [#allocation0], 840
    %v884 = vld [vmem:[%s883] sm:%s255]
    %s885 = sshllo.u32 0, 2
    %s886 = smul.addr 2, 105
    %s887 = scalar_lea.vmem %s1, %s886
    %888 = vst [vmem:[%s887] sm:%s885] %v884
    %s889 = scalar_lea.vmem [#allocation0], 848
    %v890 = vld [vmem:[%s889] sm:%s255]
    %s891 = sshllo.u32 0, 2
    %s892 = smul.addr 2, 106
    %s893 = scalar_lea.vmem %s1, %s892
    %894 = vst [vmem:[%s893] sm:%s891] %v890
    %s895 = scalar_lea.vmem [#allocation0], 856
    %v896 = vld [vmem:[%s895] sm:%s255]
    %s897 = sshllo.u32 0, 2
    %s898 = smul.addr 2, 107
    %s899 = scalar_lea.vmem %s1, %s898
    %900 = vst [vmem:[%s899] sm:%s897] %v896
    %s901 = scalar_lea.vmem [#allocation0], 864
    %v902 = vld [vmem:[%s901] sm:%s255]
    %s903 = sshllo.u32 0, 2
    %s904 = smul.addr 2, 108
    %s905 = scalar_lea.vmem %s1, %s904
    %906 = vst [vmem:[%s905] sm:%s903] %v902
    %s907 = scalar_lea.vmem [#allocation0], 872
    %v908 = vld [vmem:[%s907] sm:%s255]
    %s909 = sshllo.u32 0, 2
    %s910 = smul.addr 2, 109
    %s911 = scalar_lea.vmem %s1, %s910
    %912 = vst [vmem:[%s911] sm:%s909] %v908
    %s913 = scalar_lea.vmem [#allocation0], 880
    %v914 = vld [vmem:[%s913] sm:%s255]
    %s915 = sshllo.u32 0, 2
    %s916 = smul.addr 2, 110
    %s917 = scalar_lea.vmem %s1, %s916
    %918 = vst [vmem:[%s917] sm:%s915] %v914
    %s919 = scalar_lea.vmem [#allocation0], 888
    %v920 = vld [vmem:[%s919] sm:%s255]
    %s921 = sshllo.u32 0, 2
    %s922 = smul.addr 2, 111
    %s923 = scalar_lea.vmem %s1, %s922
    %924 = vst [vmem:[%s923] sm:%s921] %v920
    %s925 = scalar_lea.vmem [#allocation0], 896
    %v926 = vld [vmem:[%s925] sm:%s255]
    %s927 = sshllo.u32 0, 2
    %s928 = smul.addr 2, 112
    %s929 = scalar_lea.vmem %s1, %s928
    %930 = vst [vmem:[%s929] sm:%s927] %v926
    %s931 = scalar_lea.vmem [#allocation0], 904
    %v932 = vld [vmem:[%s931] sm:%s255]
    %s933 = sshllo.u32 0, 2
    %s934 = smul.addr 2, 113
    %s935 = scalar_lea.vmem %s1, %s934
    %936 = vst [vmem:[%s935] sm:%s933] %v932
    %s937 = scalar_lea.vmem [#allocation0], 912
    %v938 = vld [vmem:[%s937] sm:%s255]
    %s939 = sshllo.u32 0, 2
    %s940 = smul.addr 2, 114
    %s941 = scalar_lea.vmem %s1, %s940
    %942 = vst [vmem:[%s941] sm:%s939] %v938
    %s943 = scalar_lea.vmem [#allocation0], 920
    %v944 = vld [vmem:[%s943] sm:%s255]
    %s945 = sshllo.u32 0, 2
    %s946 = smul.addr 2, 115
    %s947 = scalar_lea.vmem %s1, %s946
    %948 = vst [vmem:[%s947] sm:%s945] %v944
    %s949 = scalar_lea.vmem [#allocation0], 928
    %v950 = vld [vmem:[%s949] sm:%s255]
    %s951 = sshllo.u32 0, 2
    %s952 = smul.addr 2, 116
    %s953 = scalar_lea.vmem %s1, %s952
    %954 = vst [vmem:[%s953] sm:%s951] %v950
    %s955 = scalar_lea.vmem [#allocation0], 936
    %v956 = vld [vmem:[%s955] sm:%s255]
    %s957 = sshllo.u32 0, 2
    %s958 = smul.addr 2, 117
    %s959 = scalar_lea.vmem %s1, %s958
    %960 = vst [vmem:[%s959] sm:%s957] %v956
    %s961 = scalar_lea.vmem [#allocation0], 944
    %v962 = vld [vmem:[%s961] sm:%s255]
    %s963 = sshllo.u32 0, 2
    %s964 = smul.addr 2, 118
    %s965 = scalar_lea.vmem %s1, %s964
    %966 = vst [vmem:[%s965] sm:%s963] %v962
    %s967 = scalar_lea.vmem [#allocation0], 952
    %v968 = vld [vmem:[%s967] sm:%s255]
    %s969 = sshllo.u32 0, 2
    %s970 = smul.addr 2, 119
    %s971 = scalar_lea.vmem %s1, %s970
    %972 = vst [vmem:[%s971] sm:%s969] %v968
    %s973 = scalar_lea.vmem [#allocation0], 960
    %v974 = vld [vmem:[%s973] sm:%s255]
    %s975 = sshllo.u32 0, 2
    %s976 = smul.addr 2, 120
    %s977 = scalar_lea.vmem %s1, %s976
    %978 = vst [vmem:[%s977] sm:%s975] %v974
    %s979 = scalar_lea.vmem [#allocation0], 968
    %v980 = vld [vmem:[%s979] sm:%s255]
    %s981 = sshllo.u32 0, 2
    %s982 = smul.addr 2, 121
    %s983 = scalar_lea.vmem %s1, %s982
    %984 = vst [vmem:[%s983] sm:%s981] %v980
    %s985 = scalar_lea.vmem [#allocation0], 976
    %v986 = vld [vmem:[%s985] sm:%s255]
    %s987 = sshllo.u32 0, 2
    %s988 = smul.addr 2, 122
    %s989 = scalar_lea.vmem %s1, %s988
    %990 = vst [vmem:[%s989] sm:%s987] %v986
    %s991 = scalar_lea.vmem [#allocation0], 984
    %v992 = vld [vmem:[%s991] sm:%s255]
    %s993 = sshllo.u32 0, 2
    %s994 = smul.addr 2, 123
    %s995 = scalar_lea.vmem %s1, %s994
    %996 = vst [vmem:[%s995] sm:%s993] %v992
    %s997 = scalar_lea.vmem [#allocation0], 992
    %v998 = vld [vmem:[%s997] sm:%s255]
    %s999 = sshllo.u32 0, 2
    %s1000 = smul.addr 2, 124
    %s1001 = scalar_lea.vmem %s1, %s1000
    %1002 = vst [vmem:[%s1001] sm:%s999] %v998
    %s1003 = scalar_lea.vmem [#allocation0], 1000
    %v1004 = vld [vmem:[%s1003] sm:%s255]
    %s1005 = sshllo.u32 0, 2
    %s1006 = smul.addr 2, 125
    %s1007 = scalar_lea.vmem %s1, %s1006
    %1008 = vst [vmem:[%s1007] sm:%s1005] %v1004
    %s1009 = scalar_lea.vmem [#allocation0], 1008
    %v1010 = vld [vmem:[%s1009] sm:%s255]
    %s1011 = sshllo.u32 0, 2
    %s1012 = smul.addr 2, 126
    %s1013 = scalar_lea.vmem %s1, %s1012
    %1014 = vst [vmem:[%s1013] sm:%s1011] %v1010
    %s1015 = scalar_lea.vmem [#allocation0], 1016
    %v1016 = vld [vmem:[%s1015] sm:%s255]
    %s1017 = sshllo.u32 0, 2
    %s1018 = smul.addr 2, 127
    %s1019 = scalar_lea.vmem %s1, %s1018
    %1020 = vst [vmem:[%s1019] sm:%s1017] %v1016

// kernel: _lambda_.1
$region0: #{_lambda_.1}
  #allocation0 [shape = 'u32[]', space=smem, size = 0x4, offset = 0x4, fixed_abs, tag = 'smem constant byte address 0x4 - core index']
  #allocation1 [shape = 'u32[144,128]{1,0:T(1,128)}', space=vmem, size = 0x12000, scoped, tag = 'internal scratch']
  %s0 = inlined_call_operand.vmem [shape: f32[2,32,128], index: 0, kind: input, shape index: {}]
  %s1 = inlined_call_operand.vmem [shape: f32[2,128,128], index: 1, kind: input, shape index: {}]
  %s2 = inlined_call_operand.vmem [shape: f32[2,1,128], index: 2, kind: input, shape index: {}]
  %s3 = inlined_call_operand.vmem [shape: f32[2,32,128], index: 3, kind: output, shape index: {}]
  %s4 = sld [smem:[#allocation0]]
  $region45: #{_lambda_.1} parent=0
    _
  %s6 = ssub.s32 1, %s4
  %s7 = scalar_select 0, %s6, %s4
  loop: start=0, step=1, limit=4
  $region2: #{_lambda_.1} parent=0 // loop_pre_header
    _
  $region3: #{_lambda_.1} parent=0 // loop_header
    %s9 = sphi 0, %s13
    %p10 = scmp.ge.s32.totalorder %s9, 4
    %s16 = sphi 0, %s28
    %s17 = sphi 0, %s24
    %s18 = sphi 0, %s16
    %s19 = sphi 0, %s17
    %s20 = sphi 0, %s18
    %s21 = sphi 0, %s19
    %s33 = sphi 0, %s35
    %s36 = sphi 0, %s33
    %s37 = sphi 0, %s36
    %s53 = sphi 0, %s37
    %s59 = sphi 0, %s61
    %s62 = sphi 0, %s59
    %s63 = sphi 0, %s62
    %s79 = sphi 0, %s63
    %s85 = sphi 0, %s87
    %s88 = sphi 0, %s85
    %s89 = sphi 0, %s88
    %s105 = sphi 0, %s89
    %s113 = sphi 0, %s115
    %s116 = sphi 0, %s113
    %s117 = sphi 0, %s116
    %s133 = sphi 0, %s117
  $region4: #{_lambda_.1} parent=0 // loop_header_branch
    %12 = sbr.rel (%p10) target = $region8
  $region5: #{_lambda_.1} parent=0 // loop_body
    %s14 = ssub.s32 %s9, 1
    %s15 = ssub.s32 %s9, 2
    %s22 = sadd.s32 1, %s17
    %p23 = scmp.ge.s32.totalorder %s22, 1
    %s24 = scalar_select %p23, 0, %s22
    %s25 = sadd.s32 1, %s16
    %s26 = scalar_select %p23, %s25, %s16
    %p27 = scmp.ge.s32.totalorder %s26, 2
    %s28 = scalar_select %p27, 0, %s26
    %s29 = ssub.s32 %s16, %s28
    %s30 = ssub.s32 %s17, %s24
    %s31 = sor.u32 %s29, %s30
    %p32 = scmp.eq.s32.totalorder %s31, 0
    %s34 = sadd.s32 %s33, 1
    %s35 = scalar_select %p32, %s33, %s34
    %p38 = pneg %p32
    %p39 = scmp.eq.s32.totalorder %s9, 1
    %p40 = por %p38, %p39
    %p41 = scmp.ne.s32.totalorder %s33, %s36
    %p42 = scmp.eq.s32.totalorder %s9, 0
    %p43 = por %p41, %p42
    %p44 = scmp.ne.s32.totalorder %s33, %s36
    %p45 = scmp.eq.s32.totalorder %s14, 1
    %p46 = por %p44, %p45
    %p47 = scmp.ne.s32.totalorder %s36, %s37
    %p48 = scmp.eq.s32.totalorder %s14, 0
    %p49 = por %p47, %p48
    %p50 = scmp.ne.s32.totalorder %s36, %s37
    %p51 = scmp.eq.s32.totalorder %s15, 1
    %p52 = por %p50, %p51
    %p54 = scmp.ne.s32.totalorder %s37, %s53
    %p55 = scmp.eq.s32.totalorder %s15, 0
    %p56 = por %p54, %p55
    %s57 = ssub.s32 %s16, %s28
    %p58 = scmp.eq.s32.totalorder %s57, 0
    %s60 = sadd.s32 %s59, 1
    %s61 = scalar_select %p58, %s59, %s60
    %p64 = pneg %p58
    %p65 = scmp.eq.s32.totalorder %s9, 1
    %p66 = por %p64, %p65
    %p67 = scmp.ne.s32.totalorder %s59, %s62
    %p68 = scmp.eq.s32.totalorder %s9, 0
    %p69 = por %p67, %p68
    %p70 = scmp.ne.s32.totalorder %s59, %s62
    %p71 = scmp.eq.s32.totalorder %s14, 1
    %p72 = por %p70, %p71
    %p73 = scmp.ne.s32.totalorder %s62, %s63
    %p74 = scmp.eq.s32.totalorder %s14, 0
    %p75 = por %p73, %p74
    %p76 = scmp.ne.s32.totalorder %s62, %s63
    %p77 = scmp.eq.s32.totalorder %s15, 1
    %p78 = por %p76, %p77
    %p80 = scmp.ne.s32.totalorder %s63, %s79
    %p81 = scmp.eq.s32.totalorder %s15, 0
    %p82 = por %p80, %p81
    %s83 = ssub.s32 %s16, %s28
    %p84 = scmp.eq.s32.totalorder %s83, 0
    %s86 = sadd.s32 %s85, 1
    %s87 = scalar_select %p84, %s85, %s86
    %p90 = pneg %p84
    %p91 = scmp.eq.s32.totalorder %s9, 1
    %p92 = por %p90, %p91
    %p93 = scmp.ne.s32.totalorder %s85, %s88
    %p94 = scmp.eq.s32.totalorder %s9, 0
    %p95 = por %p93, %p94
    %p96 = scmp.ne.s32.totalorder %s85, %s88
    %p97 = scmp.eq.s32.totalorder %s14, 1
    %p98 = por %p96, %p97
    %p99 = scmp.ne.s32.totalorder %s88, %s89
    %p100 = scmp.eq.s32.totalorder %s14, 0
    %p101 = por %p99, %p100
    %p102 = scmp.ne.s32.totalorder %s88, %s89
    %p103 = scmp.eq.s32.totalorder %s15, 1
    %p104 = por %p102, %p103
    %p106 = scmp.ne.s32.totalorder %s89, %s105
    %p107 = scmp.eq.s32.totalorder %s15, 0
    %p108 = por %p106, %p107
    %s109 = ssub.s32 %s16, %s28
    %s110 = ssub.s32 %s17, %s24
    %s111 = sor.u32 %s109, %s110
    %p112 = scmp.eq.s32.totalorder %s111, 0
    %s114 = sadd.s32 %s113, 1
    %s115 = scalar_select %p112, %s113, %s114
    %p118 = pneg %p112
    %p119 = scmp.eq.s32.totalorder %s9, 1
    %p120 = por %p118, %p119
    %p121 = scmp.ne.s32.totalorder %s113, %s116
    %p122 = scmp.eq.s32.totalorder %s9, 0
    %p123 = por %p121, %p122
    %p124 = scmp.ne.s32.totalorder %s113, %s116
    %p125 = scmp.eq.s32.totalorder %s14, 1
    %p126 = por %p124, %p125
    %p127 = scmp.ne.s32.totalorder %s116, %s117
    %p128 = scmp.eq.s32.totalorder %s14, 0
    %p129 = por %p127, %p128
    %p130 = scmp.ne.s32.totalorder %s116, %s117
    %p131 = scmp.eq.s32.totalorder %s15, 1
    %p132 = por %p130, %p131
    %p134 = scmp.ne.s32.totalorder %s117, %s133
    %p135 = scmp.eq.s32.totalorder %s15, 0
    %p136 = por %p134, %p135
    %p137 = scmp.le.s32.totalorder 1, %s9
    %p138 = scmp.lt.s32.totalorder %s9, 3
    %p139 = pnand %p137, %p138
    %p140 = pneg %p139
    // Predicated region
    $region9: #{_lambda_.1} parent=5 // pred_check
      _
    $region10: #{_lambda_.1} parent=5 // pred_check_branch
      %142 = sbr.rel (%p139) target = $region12
    $region11: #{_lambda_.1} parent=5 // pred_region
      %s143 = ssub.s32 %s9, 1
    $region12: #{_lambda_.1} parent=5 // pred_fallthru
      _
    %p144 = scmp.lt.s32.totalorder %s9, 2
    // Predicated region
    $region13: #{_lambda_.1} parent=5 // pred_check
      %p145 = pneg %p144
    $region14: #{_lambda_.1} parent=5 // pred_check_branch
      %147 = sbr.rel (%p145) target = $region16
    $region15: #{_lambda_.1} parent=5 // pred_region
      // Predicated region
      $region17: #{_lambda_.1} parent=15 // pred_check
        %p148 = pneg %p43
      $region18: #{_lambda_.1} parent=15 // pred_check_branch
        %150 = sbr.rel (%p148) target = $region20
      $region19: #{_lambda_.1} parent=15 // pred_region
        %s151 = smul.u32 4, %s17
        %p152 = scmp.lt.s32.totalorder %s16, 1
        %s153 = scalar_select %p152, %s16, 1
        %p154 = scmp.lt.s32.totalorder %s151, 3
        %s155 = scalar_select %p154, %s151, 3
        %s156 = smul.addr %s153, 4
        %s157 = sadd.s32 %s155, %s156
        %s158 = smul.addr %s157, 8
        %s159 = scalar_lea.vmem %s0, %s158
        %s160 = smul.u32 4, %s17
      $region20: #{_lambda_.1} parent=15 // pred_fallthru
        _
      // Predicated region
      $region21: #{_lambda_.1} parent=15 // pred_check
        %p161 = pneg %p69
      $region22: #{_lambda_.1} parent=15 // pred_check_branch
        %163 = sbr.rel (%p161) target = $region24
      $region23: #{_lambda_.1} parent=15 // pred_region
        %p164 = scmp.lt.s32.totalorder %s16, 1
        %s165 = scalar_select %p164, %s16, 1
        %s166 = smul.addr %s165, 16
        %s167 = smul.addr %s166, 8
        %s168 = scalar_lea.vmem %s1, %s167
      $region24: #{_lambda_.1} parent=15 // pred_fallthru
        _
      // Predicated region
      $region25: #{_lambda_.1} parent=15 // pred_check
        %p169 = pneg %p95
      $region26: #{_lambda_.1} parent=15 // pred_check_branch
        %171 = sbr.rel (%p169) target = $region28
      $region27: #{_lambda_.1} parent=15 // pred_region
        %p172 = scmp.lt.s32.totalorder %s16, 1
        %s173 = scalar_select %p172, %s16, 1
        %s174 = scalar_lea.vmem %s2, %s173
      $region28: #{_lambda_.1} parent=15 // pred_fallthru
        _
    $region16: #{_lambda_.1} parent=5 // pred_fallthru
      _
    %p175 = scmp.le.s32.totalorder 1, %s9
    %p176 = scmp.lt.s32.totalorder %s9, 3
    %p177 = pnand %p175, %p176
    %p178 = pneg %p177
    // Predicated region
    $region29: #{_lambda_.1} parent=5 // pred_check
      _
    $region30: #{_lambda_.1} parent=5 // pred_check_branch
      %180 = sbr.rel (%p177) target = $region32
    $region31: #{_lambda_.1} parent=5 // pred_region
      %s181 = ssub.s32 %s9, 1
      %s182 = smul.u32 4, %s19
      %p183 = scmp.lt.s32.totalorder %s18, 1
      %s184 = scalar_select %p183, %s18, 1
      %p185 = scmp.lt.s32.totalorder %s182, 3
      %s186 = scalar_select %p185, %s182, 3
      %s187 = smul.addr %s184, 4
      %s188 = sadd.s32 %s186, %s187
      %s189 = smul.addr %s188, 8
      %s190 = scalar_lea.vmem %s0, %s189
      %p191 = pneg %p49
      %p192 = pneg %p46
      %p193 = scmp.lt.s32.totalorder %s18, 1
      %s194 = scalar_select %p193, %s18, 1
      %s195 = smul.addr %s194, 16
      %s196 = smul.addr %s195, 8
      %s197 = scalar_lea.vmem %s1, %s196
      %p198 = pneg %p75
      %p199 = pneg %p72
      %p200 = scmp.lt.s32.totalorder %s18, 1
      %s201 = scalar_select %p200, %s18, 1
      %s202 = scalar_lea.vmem %s2, %s201
      %p203 = pneg %p101
      %p204 = pneg %p98
      %p205 = pneg %p129
      %p206 = pneg %p126
      %s207 = smul.u32 4, %s19
      %p208 = scmp.lt.s32.totalorder %s18, 1
      %s209 = scalar_select %p208, %s18, 1
      %p210 = scmp.lt.s32.totalorder %s207, 3
      %s211 = scalar_select %p210, %s207, 3
      %s212 = smul.addr %s209, 4
      %s213 = sadd.s32 %s211, %s212
      %s214 = smul.addr %s213, 8
      %s215 = scalar_lea.vmem %s3, %s214
      %s216 = smul.u32 4, %s19
      %p217 = scmp.lt.s32.totalorder %s18, 1
      %s218 = scalar_select %p217, %s18, 1
      %p219 = scmp.lt.s32.totalorder %s216, 3
      %s220 = scalar_select %p219, %s216, 3
      %s221 = smul.addr %s218, 4
      %s222 = sadd.s32 %s220, %s221
      %s223 = smul.addr %s222, 8
      %s224 = scalar_lea.vmem %s0, %s223
      %s225 = smul.u32 4, %s19
      %p226 = scmp.lt.s32.totalorder %s18, 1
      %s227 = scalar_select %p226, %s18, 1
      %s228 = smul.addr %s227, 16
      %s229 = smul.addr %s228, 8
      %s230 = scalar_lea.vmem %s1, %s229
      %p231 = scmp.lt.s32.totalorder %s18, 1
      %s232 = scalar_select %p231, %s18, 1
      %s233 = scalar_lea.vmem %s2, %s232
      %s234 = smul.u32 4, %s19
      %p235 = scmp.lt.s32.totalorder %s18, 1
      %s236 = scalar_select %p235, %s18, 1
      %p237 = scmp.lt.s32.totalorder %s234, 3
      %s238 = scalar_select %p237, %s234, 3
      %s239 = smul.addr %s236, 4
      %s240 = sadd.s32 %s238, %s239
      %s241 = smul.addr %s240, 8
      %s242 = scalar_lea.vmem %s3, %s241
      %s243 = smul.u32 4, %s19
      %v244 = vld [vmem:[%s224] sm:$0xff]
      %v245 = vld [vmem:[%s224 + $0x8] sm:$0xff]
      %v246 = vld [vmem:[%s224 + $0x10] sm:$0xff]
      %v247 = vld [vmem:[%s224 + $0x18] sm:$0xff]
      %v248 = vld [vmem:[%s230] sm:$0xff]
      %v249 = vld [vmem:[%s230 + $0x8] sm:$0xff]
      %v250 = vld [vmem:[%s230 + $0x10] sm:$0xff]
      %v251 = vld [vmem:[%s230 + $0x18] sm:$0xff]
      %v252 = vld [vmem:[%s230 + $0x20] sm:$0xff]
      %v253 = vld [vmem:[%s230 + $0x28] sm:$0xff]
      %v254 = vld [vmem:[%s230 + $0x30] sm:$0xff]
      %v255 = vld [vmem:[%s230 + $0x38] sm:$0xff]
      %v256 = vld [vmem:[%s230 + $0x40] sm:$0xff]
      %v257 = vld [vmem:[%s230 + $0x48] sm:$0xff]
      %v258 = vld [vmem:[%s230 + $0x50] sm:$0xff]
      %v259 = vld [vmem:[%s230 + $0x58] sm:$0xff]
      %v260 = vld [vmem:[%s230 + $0x60] sm:$0xff]
      %v261 = vld [vmem:[%s230 + $0x68] sm:$0xff]
      %v262 = vld [vmem:[%s230 + $0x70] sm:$0xff]
      %v263 = vld [vmem:[%s230 + $0x78] sm:$0xff]
      %v264 = vld [vmem:[%s233] sm:$0x1]
      %v266 = vlaneseq
      %v267 = vshrl.u32 %v266, 7
      %v268 = vsub.s32 0, %v267
      %v269 = vrot.slane %v264, %v268
      %271 = vmatprep.subr.mxu0 0.0
      %272 = vmatpush1.msra.mxu0 %v248
      %273 = vmatprep.subr.mxu0 0.0
      %274 = vmatpush1.msra.mxu0 %v249
      %275 = vmatprep.subr.mxu0 0.0
      %276 = vmatpush1.msra.mxu0 %v250
      %277 = vmatprep.subr.mxu0 0.0
      %278 = vmatpush1.msra.mxu0 %v251
      %279 = vmatprep.subr.mxu0 0.0
      %280 = vmatpush1.msra.mxu0 %v252
      %281 = vmatprep.subr.mxu0 0.0
      %282 = vmatpush1.msra.mxu0 %v253
      %283 = vmatprep.subr.mxu0 0.0
      %284 = vmatpush1.msra.mxu0 %v254
      %285 = vmatprep.subr.mxu0 0.0
      %286 = vmatpush1.msra.mxu0 %v255
      %287 = vmatprep.subr.mxu0 0.0
      %288 = vmatpush1.msra.mxu0 %v256
      %289 = vmatprep.subr.mxu0 0.0
      %290 = vmatpush1.msra.mxu0 %v257
      %291 = vmatprep.subr.mxu0 0.0
      %292 = vmatpush1.msra.mxu0 %v258
      %293 = vmatprep.subr.mxu0 0.0
      %294 = vmatpush1.msra.mxu0 %v259
      %295 = vmatprep.subr.mxu0 0.0
      %296 = vmatpush1.msra.mxu0 %v260
      %297 = vmatprep.subr.mxu0 0.0
      %298 = vmatpush1.msra.mxu0 %v261
      %299 = vmatprep.subr.mxu0 0.0
      %300 = vmatpush1.msra.mxu0 %v262
      %301 = vmatprep.subr.mxu0 0.0
      %302 = vmatpush1.msra.mxu0 %v263
      %303 = vmatprep.subr.mxu0 0.0
      %304 = vmatpush1.msra.mxu0 0.0
      %305 = vmatprep.subr.mxu0 0.0
      %306 = vmatpush1.msra.mxu0 0.0
      %307 = vmatprep.subr.mxu0 0.0
      %308 = vmatpush1.msra.mxu0 0.0
      %309 = vmatprep.subr.mxu0 0.0
      %310 = vmatpush1.msra.mxu0 0.0
      %311 = vmatprep.subr.mxu0 0.0
      %312 = vmatpush1.msra.mxu0 0.0
      %313 = vmatprep.subr.mxu0 0.0
      %314 = vmatpush1.msra.mxu0 0.0
      %315 = vmatprep.subr.mxu0 0.0
      %316 = vmatpush1.msra.mxu0 0.0
      %317 = vmatprep.subr.mxu0 0.0
      %318 = vmatpush1.msra.mxu0 0.0
      %319 = vmatprep.subr.mxu0 0.0
      %320 = vmatpush1.msra.mxu0 0.0
      %321 = vmatprep.subr.mxu0 0.0
      %322 = vmatpush1.msra.mxu0 0.0
      %323 = vmatprep.subr.mxu0 0.0
      %324 = vmatpush1.msra.mxu0 0.0
      %325 = vmatprep.subr.mxu0 0.0
      %326 = vmatpush1.msra.mxu0 0.0
      %327 = vmatprep.subr.mxu0 0.0
      %328 = vmatpush1.msra.mxu0 0.0
      %329 = vmatprep.subr.mxu0 0.0
      %330 = vmatpush1.msra.mxu0 0.0
      %331 = vmatprep.subr.mxu0 0.0
      %332 = vmatpush1.msra.mxu0 0.0
      %333 = vmatprep.subr.mxu0 0.0
      %334 = vmatpush1.msra.mxu0 0.0
      %335 = vmatprep.mubr.f32.mxu0 0.0
      %336 = vmatmul.mubr.f32.gmra.mrb[0].mxu0 %v244
      %v337 = vpop.f32.mrb[0].mxu0
      %v338 = vadd.f32 %v269, %v337
      %v339 = vpop.f32.mrb[0].mxu0
      %340 = vmatprep.mubr.f32.mxu0 0.0
      %341 = vmatmul.mubr.f32.gmra.mrb[0].mxu0 %v245
      %v342 = vpop.f32.mrb[0].mxu0
      %v343 = vadd.f32 %v269, %v342
      %v344 = vpop.f32.mrb[0].mxu0
      %345 = vmatprep.mubr.f32.mxu0 0.0
      %346 = vmatmul.mubr.f32.gmra.mrb[0].mxu0 %v246
      %v347 = vpop.f32.mrb[0].mxu0
      %v348 = vadd.f32 %v269, %v347
      %v349 = vpop.f32.mrb[0].mxu0
      %350 = vmatprep.mubr.f32.mxu0 0.0
      %351 = vmatmul.mubr.f32.gmra.mrb[0].mxu0 %v247
      %v352 = vpop.f32.mrb[0].mxu0
      %v353 = vadd.f32 %v269, %v352
      %v354 = vpop.f32.mrb[0].mxu0
      %355 = vdwg.mxu0
      %356 = vst [vmem:[%s242] sm:$0xff] %v338
      %357 = vst [vmem:[%s242 + $0x8] sm:$0xff] %v343
      %358 = vst [vmem:[%s242 + $0x10] sm:$0xff] %v348
      %359 = vst [vmem:[%s242 + $0x18] sm:$0xff] %v353
      %s360 = smul.u32 4, %s19
      %p361 = scmp.lt.s32.totalorder %s18, 1
      %s362 = scalar_select %p361, %s18, 1
      %p363 = scmp.lt.s32.totalorder %s360, 3
      %s364 = scalar_select %p363, %s360, 3
      %s365 = smul.addr %s362, 4
      %s366 = sadd.s32 %s364, %s365
      %s367 = smul.addr %s366, 8
      %s368 = scalar_lea.vmem %s3, %s367
      // Predicated region
      $region33: #{_lambda_.1} parent=31 // pred_check
        %p369 = pneg %p126
      $region34: #{_lambda_.1} parent=31 // pred_check_branch
        %371 = sbr.rel (%p369) target = $region36
      $region35: #{_lambda_.1} parent=31 // pred_region
        %s372 = smul.u32 4, %s19
      $region36: #{_lambda_.1} parent=31 // pred_fallthru
        _
    $region32: #{_lambda_.1} parent=5 // pred_fallthru
      _
    %p373 = scmp.le.s32.totalorder 2, %s9
    // Predicated region
    $region37: #{_lambda_.1} parent=5 // pred_check
      %p374 = pneg %p373
    $region38: #{_lambda_.1} parent=5 // pred_check_branch
      %376 = sbr.rel (%p374) target = $region40
    $region39: #{_lambda_.1} parent=5 // pred_region
      %s377 = ssub.s32 %s9, 2
      // Predicated region
      $region41: #{_lambda_.1} parent=39 // pred_check
        %p378 = pneg %p132
      $region42: #{_lambda_.1} parent=39 // pred_check_branch
        %380 = sbr.rel (%p378) target = $region44
      $region43: #{_lambda_.1} parent=39 // pred_region
        %s381 = smul.u32 4, %s21
        %p382 = scmp.lt.s32.totalorder %s20, 1
        %s383 = scalar_select %p382, %s20, 1
        %p384 = scmp.lt.s32.totalorder %s381, 3
        %s385 = scalar_select %p384, %s381, 3
        %s386 = smul.addr %s383, 4
        %s387 = sadd.s32 %s385, %s386
        %s388 = smul.addr %s387, 8
        %s389 = scalar_lea.vmem %s3, %s388
      $region44: #{_lambda_.1} parent=39 // pred_fallthru
        _
    $region40: #{_lambda_.1} parent=5 // pred_fallthru
      _
  $region6: #{_lambda_.1} parent=0 // loop_footer
    %s13 = sadd.s32 1, %s9
  $region7: #{_lambda_.1} parent=0 // loop_footer_branch
    %8 = sbr.rel target = $region3
  $region8: #{_lambda_.1} parent=0 // loop_exit
    _

</llo_original>
